<compile_context>
chip_gen: v5e
topology: v5e:2x2
jax: 0.10.0
libtpu: 0.0.40
codegen_flags: <defaults>
</compile_context>

<pallas_src>
import functools

import jax
import jax.numpy as jnp
from jax.experimental import pallas as pl
from jax.experimental.pallas import tpu as pltpu

BN_EPS = 1e-5          # python float (never captured as a traced constant)
NEG_BIG = -1e30        # python float (fixes the "captures constants" error)


# --------------------------------------------------------------------------- #
# Layer 1: SAGEConv -> (folded BN) -> PReLU -> (residual); pre-contracts both
# layer-2 terms (h @ Wl2 and h @ Wr2) so `h` never hits HBM.
# --------------------------------------------------------------------------- #
def sage_layer1_kernel(adj_ref, xk_ref, xi_ref, invdeg_ref,
                       wcat_ref, b1_ref, wl2_ref, wr2_ref, alpha_ref,
                       hw_ref, hr2_ref, acc_ref, *, use_residual):
    k = pl.program_id(1)

    @pl.when(k == 0)
    def _():
        acc_ref[...] = jnp.zeros_like(acc_ref)

    # unnormalized aggregation: acc(i-rows) += A[i, k-block] @ x[k-block]
    # (int8 adj upcast to bf16; x already bf16 in HBM; f32 accumulate)
    acc_ref[...] += jnp.dot(adj_ref[...].astype(jnp.bfloat16), xk_ref[...],
                            preferred_element_type=jnp.float32)

    @pl.when(k == pl.num_programs(1) - 1)
    def _():
        # deferred mean normalization (f32 inv_deg, exact 0/1 adjacency)
        agg = (acc_ref[...] * invdeg_ref[...]).astype(jnp.bfloat16)  # (TM, Cin_p)
        x_root = xi_ref[...]                                         # (TM, Cin_p) bf16

        # fused epilogue: [agg | x_root] @ [Wl1 ; Wr1]  (K = 2*Cin_p), BN folded
        hx = jnp.concatenate([agg, x_root], axis=-1)                 # (TM, 2*Cin_p)
        h = (jnp.dot(hx, wcat_ref[...], preferred_element_type=jnp.float32)
             + b1_ref[...])

        # PReLU (single shared alpha, from SMEM)
        alpha = alpha_ref[0]
        h = jnp.where(h > 0, h, alpha * h)

        # dropout: identity in eval mode
        if use_residual:                 # static (hidden == in_ch)
            h = h + x_root.astype(jnp.float32)

        h_bf = h.astype(jnp.bfloat16)
        # pre-contract both layer-2 terms (shrinks channel dim before the NxN agg)
        hw_ref[...] = jnp.dot(h_bf, wl2_ref[...],
                              preferred_element_type=jnp.float32).astype(jnp.bfloat16)
        hr2_ref[...] = jnp.dot(h_bf, wr2_ref[...],
                               preferred_element_type=jnp.float32).astype(jnp.bfloat16)


# --------------------------------------------------------------------------- #
# Layer 2: aggregate the pre-contracted (h @ Wl2), normalize, add pre-contracted
# root term + bias, log_softmax over the (masked) channel lanes.
# --------------------------------------------------------------------------- #
def sage_layer2_kernel(adj_ref, hwk_ref, hr2_ref, invdeg_ref, b2_ref,
                       out_ref, acc_ref, *, out_ch):
    k = pl.program_id(1)

    @pl.when(k == 0)
    def _():
        acc_ref[...] = jnp.zeros_like(acc_ref)

    acc_ref[...] += jnp.dot(adj_ref[...].astype(jnp.bfloat16), hwk_ref[...],
                            preferred_element_type=jnp.float32)

    @pl.when(k == pl.num_programs(1) - 1)
    def _():
        z = (acc_ref[...] * invdeg_ref[...]
             + hr2_ref[...].astype(jnp.float32)
             + b2_ref[...])

        # log_softmax over the real output channels only (lanes >= out_ch are padding)
        col = jax.lax.broadcasted_iota(jnp.int32, z.shape, 1)
        valid = col < out_ch
        zm = jnp.where(valid, z, NEG_BIG)
        m = jnp.max(zm, axis=1, keepdims=True)
        s = zm - m
        e = jnp.where(valid, jnp.exp(s), 0.0)
        lse = jnp.log(jnp.sum(e, axis=1, keepdims=True))
        out_ref[...] = s - lse


# --------------------------------------------------------------------------- #
# Helpers
# --------------------------------------------------------------------------- #
def _pick_tile(n):
    # largest tile in {2048,...,128} dividing N while keeping >= 2 row tiles
    for t in (2048, 1024, 512, 256, 128):
        if n % t == 0 and n // t >= 2:
            return t
    for t in (2048, 1024, 512, 256, 128):
        if n % t == 0:
            return t
    return n


def _vmem_estimate(tm, tk, cin_p, hid_p, out_p):
    db = 2  # double-buffered streamed operands
    l1 = (db * tm * tk * 1                 # adj int8
          + db * tk * cin_p * 2            # xk bf16
          + db * tm * cin_p * 2            # xi bf16
          + db * tm * 4                    # inv_deg
          + db * 2 * cin_p * hid_p * 2     # stacked [Wl1;Wr1] bf16
          + db * hid_p * 4                 # b1
          + db * 2 * hid_p * out_p * 2     # Wl2 + Wr2 bf16
          + db * 2 * tm * out_p * 2        # hw + hr2 outputs bf16
          + tm * cin_p * 4)                # f32 accumulator scratch
    l2 = (db * tm * tk * 1
          + db * tk * out_p * 2
          + db * tm * out_p * 2
          + db * tm * 4
          + db * out_p * 4
          + db * tm * out_p * 4
          + tm * out_p * 4)
    return max(l1, l2)


# --------------------------------------------------------------------------- #
# Wrapper
# --------------------------------------------------------------------------- #
def graphsage_forward(x, edge_index, params, *, tm=None, tk=None):
    N, in_ch = x.shape
    hidden = params["wl1"].shape[0]     # PyTorch Linear weights are (out, in)
    out_ch = params["wl2"].shape[0]

    def rup(c):
        return ((c + 127) // 128) * 128

    cin_p, hid_p, out_p = rup(in_ch), rup(hidden), rup(out_ch)

    if tm is None:
        tm = _pick_tile(N)
    if tk is None:
        tk = _pick_tile(N)
    assert N % tm == 0 and N % tk == 0, "N must be a multiple of the tile sizes"

    # ---- glue: unnormalized adjacency counts (int8, exact) + f32 inverse degree ----
    src, tgt = edge_index[0], edge_index[1]
    counts = jnp.zeros((N, N), jnp.float32).at[tgt, src].add(1.0)
    deg = jnp.sum(counts, axis=1, keepdims=True)
    adj_i8 = counts.astype(jnp.int8)                              # 1 B/elem HBM stream
    inv_deg = (1.0 / jnp.maximum(deg, 1.0)).astype(jnp.float32)   # (N, 1)

    # ---- glue: pad node features to lane-dense width, store bf16 in HBM ----
    xp = jnp.zeros((N, cin_p), jnp.float32).at[:, :in_ch].set(x).astype(jnp.bfloat16)

    # ---- glue: fold inference BatchNorm + lin_l bias into layer-1 params ----
    scale = params["bn_gamma"] * jax.lax.rsqrt(params["bn_var"] + BN_EPS)   # (hidden,)
    wl1 = params["wl1"].T * scale[None, :]                                  # (in, hid)
    wr1 = params["wr1"].T * scale[None, :]
    b1 = (params["bl1"] - params["bn_mean"]) * scale + params["bn_beta"]

    def pad2(w, r, c):
        return jnp.zeros((r, c), jnp.float32).at[:w.shape[0], :w.shape[1]].set(w)

    # stacked [Wl1 ; Wr1] -> one K = 2*cin_p epilogue matmul
    wcat_p = jnp.concatenate([pad2(wl1, cin_p, hid_p),
                              pad2(wr1, cin_p, hid_p)], axis=0).astype(jnp.bfloat16)
    b1_p = jnp.zeros((1, hid_p), jnp.float32).at[0, :hidden].set(b1)
    wl2_p = pad2(params["wl2"].T, hid_p, out_p).astype(jnp.bfloat16)
    wr2_p = pad2(params["wr2"].T, hid_p, out_p).astype(jnp.bfloat16)
    b2_p = jnp.zeros((1, out_p), jnp.float32).at[0, :out_ch].set(params["bl2"])
    alpha = params["prelu_alpha"].reshape(1).astype(jnp.float32)

    use_residual = (hidden == in_ch)    # matches `x_main.shape[-1] == x.shape[-1]`

    grid = (N // tm, N // tk)
    vmem_limit = int(min(64 * 1024 * 1024,
                         max(16 * 1024 * 1024,
                             int(1.5 * _vmem_estimate(tm, tk, cin_p, hid_p, out_p))
                             + (2 << 20))))
    cparams = pltpu.CompilerParams(
        dimension_semantics=("parallel", "arbitrary"),   # row tiles shard across TCs
        vmem_limit_bytes=vmem_limit)

    def full(r, c):
        return pl.BlockSpec((r, c), lambda i, k: (0, 0))

    smem_spec = pl.BlockSpec(memory_space=pltpu.MemorySpace.SMEM)

    # ---- layer 1 (SAGEConv + BN + PReLU + residual; pre-contract layer-2 terms) ----
    hw, hr2 = pl.pallas_call(
        functools.partial(sage_layer1_kernel, use_residual=use_residual),
        out_shape=(jax.ShapeDtypeStruct((N, out_p), jnp.bfloat16),   # h @ Wl2
                   jax.ShapeDtypeStruct((N, out_p), jnp.bfloat16)),  # h @ Wr2
        grid=grid,
        in_specs=[pl.BlockSpec((tm, tk), lambda i, k: (i, k)),       # adj tile (int8)
                  pl.BlockSpec((tk, cin_p), lambda i, k: (k, 0)),    # x rows (aggregate)
                  pl.BlockSpec((tm, cin_p), lambda i, k: (i, 0)),    # x rows (root term)
                  pl.BlockSpec((tm, 1), lambda i, k: (i, 0)),        # inv_deg
                  full(2 * cin_p, hid_p),                            # [Wl1;Wr1] (BN-folded)
                  full(1, hid_p),                                    # bias (BN-folded)
                  full(hid_p, out_p),                                # Wl2 (pre-contract)
                  full(hid_p, out_p),                                # Wr2 (pre-contract)
                  smem_spec],                                        # prelu alpha
        out_specs=(pl.BlockSpec((tm, out_p), lambda i, k: (i, 0)),
                   pl.BlockSpec((tm, out_p), lambda i, k: (i, 0))),
        scratch_shapes=[pltpu.VMEM((tm, cin_p), jnp.float32)],
        compiler_params=cparams,
    )(adj_i8, xp, xp, inv_deg, wcat_p, b1_p, wl2_p, wr2_p, alpha)

    # ---- layer 2 (SAGEConv) + log_softmax ----
    out_padded = pl.pallas_call(
        functools.partial(sage_layer2_kernel, out_ch=out_ch),
        out_shape=jax.ShapeDtypeStruct((N, out_p), jnp.float32),
        grid=grid,
        in_specs=[pl.BlockSpec((tm, tk), lambda i, k: (i, k)),       # adj tile (int8)
                  pl.BlockSpec((tk, out_p), lambda i, k: (k, 0)),    # h@Wl2 rows (agg)
                  pl.BlockSpec((tm, out_p), lambda i, k: (i, 0)),    # h@Wr2 rows (root)
                  pl.BlockSpec((tm, 1), lambda i, k: (i, 0)),        # inv_deg
                  full(1, out_p)],                                   # bias2
        out_specs=pl.BlockSpec((tm, out_p), lambda i, k: (i, 0)),
        scratch_shapes=[pltpu.VMEM((tm, out_p), jnp.float32)],
        compiler_params=cparams,
    )(adj_i8, hw, hr2, inv_deg, b2_p)

    return out_padded[:, :out_ch]


# --------------------------------------------------------------------------- #
# Parameter init (matches the PyTorch module's defaults)
# --------------------------------------------------------------------------- #
def init_params(key, in_ch, hidden, out_ch):
    ks = jax.random.split(key, 6)

    def lin(k, fan_out, fan_in):
        bound = 1.0 / jnp.sqrt(jnp.float32(fan_in))
        return jax.random.uniform(k, (fan_out, fan_in), jnp.float32,
                                  minval=-bound, maxval=bound)

    return {
        # SAGEConv 1: lin_l (bias=True) on aggregated, lin_r (bias=False) on root
        "wl1": lin(ks[0], hidden, in_ch),
        "bl1": jax.random.uniform(ks[1], (hidden,), jnp.float32,
                                  minval=-1.0 / jnp.sqrt(jnp.float32(in_ch)),
                                  maxval=1.0 / jnp.sqrt(jnp.float32(in_ch))),
        "wr1": lin(ks[2], hidden, in_ch),
        # BatchNorm1d(hidden) defaults
        "bn_gamma": jnp.ones((hidden,), jnp.float32),
        "bn_beta": jnp.zeros((hidden,), jnp.float32),
        "bn_mean": jnp.zeros((hidden,), jnp.float32),
        "bn_var": jnp.ones((hidden,), jnp.float32),
        # PReLU default init
        "prelu_alpha": jnp.full((1,), 0.25, jnp.float32),
        # SAGEConv 2
        "wl2": lin(ks[3], out_ch, hidden),
        "bl2": jax.random.uniform(ks[4], (out_ch,), jnp.float32,
                                  minval=-1.0 / jnp.sqrt(jnp.float32(hidden)),
                                  maxval=1.0 / jnp.sqrt(jnp.float32(hidden))),
        "wr2": lin(ks[5], out_ch, hidden),
    }


if __name__ == "__main__":
    key = jax.random.PRNGKey(0)
    k_x, k_p, k_e = jax.random.split(key, 3)

    N, in_ch, hidden, out_ch = 512, 16, 32, 8

    x = jax.random.normal(k_x, (N, in_ch), jnp.float32)

    # deterministic small graph: ring (both directions) + a few random edges
    idx = jnp.arange(N, dtype=jnp.int32)
    rand_tgt = jax.random.randint(k_e, (N,), 0, N, dtype=jnp.int32)
    src = jnp.concatenate([idx, (idx + 1) % N, idx])
    tgt = jnp.concatenate([(idx + 1) % N, idx, rand_tgt])
    edge_index = jnp.stack([src, tgt], axis=0)          # (2, 3N)

    params = init_params(k_p, in_ch, hidden, out_ch)

    out = graphsage_forward(x, edge_index, params)
    out = jax.block_until_ready(out)

    assert out.shape == (N, out_ch)
    # rows of log_softmax must sum to ~1 in prob space
    assert bool(jnp.allclose(jnp.sum(jnp.exp(out), axis=1), 1.0, atol=1e-3))
    assert bool(jnp.all(jnp.isfinite(out)))

    print("KERNEL_OK")
</pallas_src>

<mosaic_0001>
module attributes {stable_mosaic.version = 11 : i64} {
  func.func @sage_layer1_kernel(%arg0: i32, %arg1: i32, %arg2: memref<256x256xi8, #tpu.memory_space<vmem>>, %arg3: memref<256x128xbf16, #tpu.memory_space<vmem>>, %arg4: memref<256x128xbf16, #tpu.memory_space<vmem>>, %arg5: memref<256x1xf32, #tpu.memory_space<vmem>>, %arg6: memref<256x128xbf16, #tpu.memory_space<vmem>>, %arg7: memref<1x128xf32, #tpu.memory_space<vmem>>, %arg8: memref<128x128xbf16, #tpu.memory_space<vmem>>, %arg9: memref<128x128xbf16, #tpu.memory_space<vmem>>, %arg10: memref<1xf32, #tpu.memory_space<smem>>, %arg11: memref<256x128xbf16, #tpu.memory_space<vmem>>, %arg12: memref<256x128xbf16, #tpu.memory_space<vmem>>, %arg13: memref<256x128xf32, #tpu.memory_space<vmem>>) attributes {dimension_semantics = [#tpu.dimension_semantics<parallel>, #tpu.dimension_semantics<arbitrary>], iteration_bounds = array<i64: 2, 2>, scalar_prefetch = 0 : i64, scratch_operands = 1 : i64, tpu.core_type = #tpu.core_type<tc>, window_params = [{transform_indices = @transform_0, window_bounds = array<i64: 256, 256>}, {transform_indices = @transform_1, window_bounds = array<i64: 256, 128>}, {transform_indices = @transform_2, window_bounds = array<i64: 256, 128>}, {transform_indices = @transform_3, window_bounds = array<i64: 256, 1>}, {pipeline_mode = #tpu.pipeline_mode<synchronous>, transform_indices = @transform_4, window_bounds = array<i64: 256, 128>}, {pipeline_mode = #tpu.pipeline_mode<synchronous>, transform_indices = @transform_5, window_bounds = array<i64: 1, 128>}, {pipeline_mode = #tpu.pipeline_mode<synchronous>, transform_indices = @transform_6, window_bounds = array<i64: 128, 128>}, {pipeline_mode = #tpu.pipeline_mode<synchronous>, transform_indices = @transform_7, window_bounds = array<i64: 128, 128>}, {transform_indices = @transform_8, window_bounds = array<i64: 1>}, {transform_indices = @transform_9, window_bounds = array<i64: 256, 128>}, {transform_indices = @transform_10, window_bounds = array<i64: 256, 128>}]} {
    %c0_i32 = arith.constant 0 : i32
    %0 = arith.cmpi eq, %arg1, %c0_i32 : i32
    %1 = arith.extui %0 : i1 to i32
    %c0_i32_0 = arith.constant 0 : i32
    %2 = arith.cmpi ne, %1, %c0_i32_0 : i32
    scf.if %2 {
      %cst_9 = arith.constant 0.000000e+00 : f32
      %13 = vector.broadcast %cst_9 : f32 to vector<256x128xf32>
      %c0_10 = arith.constant 0 : index
      %c0_11 = arith.constant 0 : index
      %14 = vector.load %arg13[%c0_10, %c0_11] : memref<256x128xf32, #tpu.memory_space<vmem>>, vector<256x128xf32>
      tpu.vector_store %arg13[%c0_10, %c0_11], %13 {strides = array<i32>} : memref<256x128xf32, #tpu.memory_space<vmem>>, vector<256x128xf32>,
    } else {
    }
    %c0 = arith.constant 0 : index
    %c0_1 = arith.constant 0 : index
    %3 = vector.load %arg13[%c0, %c0_1] : memref<256x128xf32, #tpu.memory_space<vmem>>, vector<256x128xf32>
    %c0_2 = arith.constant 0 : index
    %c0_3 = arith.constant 0 : index
    %4 = vector.load %arg2[%c0_2, %c0_3] : memref<256x256xi8, #tpu.memory_space<vmem>>, vector<256x256xi8>
    %5 = arith.sitofp %4 : vector<256x256xi8> to vector<256x256xbf16>
    %c0_4 = arith.constant 0 : index
    %c0_5 = arith.constant 0 : index
    %6 = vector.load %arg3[%c0_4, %c0_5] : memref<256x128xbf16, #tpu.memory_space<vmem>>, vector<256x128xbf16>
    %cst = arith.constant dense<0.000000e+00> : vector<256x128xf32>
    %7 = tpu.matmul %5, %6, %cst {dimension_numbers = #tpu.dot_dimension_numbers<[1], [0], [0], [1], [0, 0, 1, 1], [], []>} : vector<256x256xbf16>, vector<256x128xbf16>, vector<256x128xf32> -> vector<256x128xf32>
    %8 = arith.addf %3, %7 : vector<256x128xf32>
    %c0_6 = arith.constant 0 : index
    %c0_7 = arith.constant 0 : index
    %9 = vector.load %arg13[%c0_6, %c0_7] : memref<256x128xf32, #tpu.memory_space<vmem>>, vector<256x128xf32>
    tpu.vector_store %arg13[%c0_6, %c0_7], %8 {strides = array<i32>} : memref<256x128xf32, #tpu.memory_space<vmem>>, vector<256x128xf32>,
    %c1_i32 = arith.constant 1 : i32
    %10 = arith.cmpi eq, %arg1, %c1_i32 : i32
    %11 = arith.extui %10 : i1 to i32
    %c0_i32_8 = arith.constant 0 : i32
    %12 = arith.cmpi ne, %11, %c0_i32_8 : i32
    scf.if %12 {
      %c0_9 = arith.constant 0 : index
      %c0_10 = arith.constant 0 : index
      %13 = vector.load %arg13[%c0_9, %c0_10] : memref<256x128xf32, #tpu.memory_space<vmem>>, vector<256x128xf32>
      %c0_11 = arith.constant 0 : index
      %c0_12 = arith.constant 0 : index
      %14 = vector.load %arg5[%c0_11, %c0_12] : memref<256x1xf32, #tpu.memory_space<vmem>>, vector<256x1xf32>
      %15 = vector.broadcast %14 : vector<256x1xf32> to vector<256x128xf32>
      %16 = arith.mulf %13, %15 : vector<256x128xf32>
      %17 = arith.truncf %16 : vector<256x128xf32> to vector<256x128xbf16>
      %c0_13 = arith.constant 0 : index
      %c0_14 = arith.constant 0 : index
      %18 = vector.load %arg4[%c0_13, %c0_14] : memref<256x128xbf16, #tpu.memory_space<vmem>>, vector<256x128xbf16>
      %19 = tpu.concatenate %17, %18 in 1 : vector<256x128xbf16>, vector<256x128xbf16> -> vector<256x256xbf16>
      %c0_15 = arith.constant 0 : index
      %c0_16 = arith.constant 0 : index
      %20 = vector.load %arg6[%c0_15, %c0_16] : memref<256x128xbf16, #tpu.memory_space<vmem>>, vector<256x128xbf16>
      %cst_17 = arith.constant dense<0.000000e+00> : vector<256x128xf32>
      %21 = tpu.matmul %19, %20, %cst_17 {dimension_numbers = #tpu.dot_dimension_numbers<[1], [0], [0], [1], [0, 0, 1, 1], [], []>} : vector<256x256xbf16>, vector<256x128xbf16>, vector<256x128xf32> -> vector<256x128xf32>
      %c0_18 = arith.constant 0 : index
      %c0_19 = arith.constant 0 : index
      %22 = vector.load %arg7[%c0_18, %c0_19] : memref<1x128xf32, #tpu.memory_space<vmem>>, vector<1x128xf32>
      %23 = vector.broadcast %22 : vector<1x128xf32> to vector<256x128xf32>
      %24 = arith.addf %21, %23 : vector<256x128xf32>
      %c0_20 = arith.constant 0 : index
      %25 = memref.load %arg10[%c0_20] : memref<1xf32, #tpu.memory_space<smem>>
      %cst_21 = arith.constant 0.000000e+00 : f32
      %26 = vector.broadcast %cst_21 : f32 to vector<256x128xf32>
      %27 = arith.cmpf ogt, %24, %26 : vector<256x128xf32>
      %28 = vector.broadcast %25 : f32 to vector<256x128xf32>
      %29 = arith.mulf %28, %24 : vector<256x128xf32>
      %30 = arith.select %27, %24, %29 : vector<256x128xi1>, vector<256x128xf32>
      %31 = arith.truncf %30 : vector<256x128xf32> to vector<256x128xbf16>
      %c0_22 = arith.constant 0 : index
      %c0_23 = arith.constant 0 : index
      %32 = vector.load %arg8[%c0_22, %c0_23] : memref<128x128xbf16, #tpu.memory_space<vmem>>, vector<128x128xbf16>
      %cst_24 = arith.constant dense<0.000000e+00> : vector<256x128xf32>
      %33 = tpu.matmul %31, %32, %cst_24 {dimension_numbers = #tpu.dot_dimension_numbers<[1], [0], [0], [1], [0, 0, 1, 1], [], []>} : vector<256x128xbf16>, vector<128x128xbf16>, vector<256x128xf32> -> vector<256x128xf32>
      %34 = arith.truncf %33 : vector<256x128xf32> to vector<256x128xbf16>
      %c0_25 = arith.constant 0 : index
      %c0_26 = arith.constant 0 : index
      %35 = vector.load %arg11[%c0_25, %c0_26] : memref<256x128xbf16, #tpu.memory_space<vmem>>, vector<256x128xbf16>
      tpu.vector_store %arg11[%c0_25, %c0_26], %34 {strides = array<i32>} : memref<256x128xbf16, #tpu.memory_space<vmem>>, vector<256x128xbf16>,
      %c0_27 = arith.constant 0 : index
      %c0_28 = arith.constant 0 : index
      %36 = vector.load %arg9[%c0_27, %c0_28] : memref<128x128xbf16, #tpu.memory_space<vmem>>, vector<128x128xbf16>
      %cst_29 = arith.constant dense<0.000000e+00> : vector<256x128xf32>
      %37 = tpu.matmul %31, %36, %cst_29 {dimension_numbers = #tpu.dot_dimension_numbers<[1], [0], [0], [1], [0, 0, 1, 1], [], []>} : vector<256x128xbf16>, vector<128x128xbf16>, vector<256x128xf32> -> vector<256x128xf32>
      %38 = arith.truncf %37 : vector<256x128xf32> to vector<256x128xbf16>
      %c0_30 = arith.constant 0 : index
      %c0_31 = arith.constant 0 : index
      %39 = vector.load %arg12[%c0_30, %c0_31] : memref<256x128xbf16, #tpu.memory_space<vmem>>, vector<256x128xbf16>
      tpu.vector_store %arg12[%c0_30, %c0_31], %38 {strides = array<i32>} : memref<256x128xbf16, #tpu.memory_space<vmem>>, vector<256x128xbf16>,
    } else {
    }
    return
  }
  func.func @transform_0(%arg0: i32, %arg1: i32) -> (i32, i32) {
    %c0_i32 = arith.constant 0 : i32
    return %arg0, %arg1 : i32, i32
  }
  func.func @transform_1(%arg0: i32, %arg1: i32) -> (i32, i32) {
    %c0_i32 = arith.constant 0 : i32
    %c0_i32_0 = arith.constant 0 : i32
    return %arg1, %c0_i32 : i32, i32
  }
  func.func @transform_2(%arg0: i32, %arg1: i32) -> (i32, i32) {
    %c0_i32 = arith.constant 0 : i32
    %c0_i32_0 = arith.constant 0 : i32
    return %arg0, %c0_i32 : i32, i32
  }
  func.func @transform_3(%arg0: i32, %arg1: i32) -> (i32, i32) {
    %c0_i32 = arith.constant 0 : i32
    %c0_i32_0 = arith.constant 0 : i32
    return %arg0, %c0_i32 : i32, i32
  }
  func.func @transform_4(%arg0: i32, %arg1: i32) -> (i32, i32) {
    %c0_i32 = arith.constant 0 : i32
    %c0_i32_0 = arith.constant 0 : i32
    %c0_i32_1 = arith.constant 0 : i32
    return %c0_i32, %c0_i32_0 : i32, i32
  }
  func.func @transform_5(%arg0: i32, %arg1: i32) -> (i32, i32) {
    %c0_i32 = arith.constant 0 : i32
    %c0_i32_0 = arith.constant 0 : i32
    %c0_i32_1 = arith.constant 0 : i32
    return %c0_i32, %c0_i32_0 : i32, i32
  }
  func.func @transform_6(%arg0: i32, %arg1: i32) -> (i32, i32) {
    %c0_i32 = arith.constant 0 : i32
    %c0_i32_0 = arith.constant 0 : i32
    %c0_i32_1 = arith.constant 0 : i32
    return %c0_i32, %c0_i32_0 : i32, i32
  }
  func.func @transform_7(%arg0: i32, %arg1: i32) -> (i32, i32) {
    %c0_i32 = arith.constant 0 : i32
    %c0_i32_0 = arith.constant 0 : i32
    %c0_i32_1 = arith.constant 0 : i32
    return %c0_i32, %c0_i32_0 : i32, i32
  }
  func.func @transform_8(%arg0: i32, %arg1: i32) -> i32 {
    %c0_i32 = arith.constant 0 : i32
    %c0_i32_0 = arith.constant 0 : i32
    return %c0_i32 : i32
  }
  func.func @transform_9(%arg0: i32, %arg1: i32) -> (i32, i32) {
    %c0_i32 = arith.constant 0 : i32
    %c0_i32_0 = arith.constant 0 : i32
    return %arg0, %c0_i32 : i32, i32
  }
  func.func @transform_10(%arg0: i32, %arg1: i32) -> (i32, i32) {
    %c0_i32 = arith.constant 0 : i32
    %c0_i32_0 = arith.constant 0 : i32
    return %arg0, %c0_i32 : i32, i32
  }
}

</mosaic_0001>

<llo_original>
// kernel: tpu_custom_call.1
$region0: #{tpu_custom_call.1}
  #allocation0 [shape = 'u32[]', space=smem, size = 0x4, offset = 0x4, fixed_abs, tag = 'smem constant byte address 0x4 - core index']
  #allocation1 [shape = 'u32[72,128]{1,0:T(1,128)}', space=vmem, size = 0x9000, scoped, tag = 'internal scratch']
  #allocation2 [shape = 'f32[256,128]{1,0:T(8,128)}', space=vmem, size = 0x20000, scoped, tag = 'scratch operand']
  #allocation3 [shape = 'f32[1]{0:T(128)S(6)}', space=smem, size = 0x200, scoped, tag = 'scoped memory for tpu_custom_call.1']
  %s0 = inlined_call_operand.vmem [shape: s8[512,512], index: 0, kind: input, shape index: {}]
  %s1 = inlined_call_operand.hbm [shape: bf16[512,128], index: 1, kind: input, shape index: {}]
  %s2 = inlined_call_operand.hbm [shape: bf16[512,128], index: 2, kind: input, shape index: {}]
  %s3 = inlined_call_operand.vmem [shape: f32[512,1], index: 3, kind: input, shape index: {}]
  %s4 = inlined_call_operand.hbm [shape: bf16[256,128], index: 4, kind: input, shape index: {}]
  %s5 = inlined_call_operand.vmem [shape: f32[1,128], index: 5, kind: input, shape index: {}]
  %s6 = inlined_call_operand.hbm [shape: bf16[128,128], index: 6, kind: input, shape index: {}]
  %s7 = inlined_call_operand.hbm [shape: bf16[128,128], index: 7, kind: input, shape index: {}]
  %s8 = inlined_call_operand.<no memory space> [shape: f32[1], index: 8, kind: input, shape index: {}]
  %s9 = inlined_call_operand.hbm [shape: bf16[512,128], index: 9, kind: output, shape index: {0}]
  %s10 = inlined_call_operand.hbm [shape: bf16[512,128], index: 10, kind: output, shape index: {1}]
  %11 = xla_tuple %s9, %s10
  %s12 = sld [smem:[#allocation0]]
  $region128: #{tpu_custom_call.1} parent=0
    _
  %s14 = ssub.s32 1, %s12
  %s15 = scalar_select 0, %s14, %s12
  %16 = sst [smem:[#allocation3]] %s8
  $region1: #{tpu_custom_call.1} parent=0
    #allocation4 [shape = 'u8[131072]{0}', space=vmem, size = 0x20000, scoped, tag = 'input window, operand 0']
    #allocation5 [shape = 'u8[131072]{0}', space=vmem, size = 0x20000, scoped, tag = 'input window, operand 1']
    #allocation6 [shape = 's32[2]{0}', space=sflag, size = 0x8, scoped, tag = 'scoped memory for tpu_custom_call.1']
    #allocation7 [shape = 's32[2]{0}', space=sflag, size = 0x8, scoped, tag = 'scoped memory for tpu_custom_call.1']
    #allocation8 [shape = 'u8[131072]{0}', space=vmem, size = 0x20000, scoped, tag = 'input window, operand 2']
    #allocation9 [shape = 's32[2]{0}', space=sflag, size = 0x8, scoped, tag = 'scoped memory for tpu_custom_call.1']
    #allocation10 [shape = 'u8[65536]{0}', space=vmem, size = 0x10000, scoped, tag = 'input window, operand 4, single buffered']
    #allocation11 [shape = 'u8[32768]{0}', space=vmem, size = 0x8000, scoped, tag = 'input window, operand 6, single buffered']
    #allocation12 [shape = 's32[1]{0}', space=sflag, size = 0x4, scoped, tag = 'scoped memory for tpu_custom_call.1']
    #allocation13 [shape = 'u8[32768]{0}', space=vmem, size = 0x8000, scoped, tag = 'input window, operand 7, single buffered']
    #allocation14 [shape = 'u8[131072]{0}', space=vmem, size = 0x20000, scoped, tag = 'output window, operand 0']
    #allocation15 [shape = 'u8[131072]{0}', space=vmem, size = 0x20000, scoped, tag = 'output window, operand 1']
    #allocation16 [shape = 's32[2]{0}', space=sflag, size = 0x8, scoped, tag = 'scoped memory for tpu_custom_call.1']
    %17 = vsyncpa [#allocation6], 0
    %s18 = scalar_lea.sflag [#allocation6], 1
    %19 = vsyncpa %s18, 0
    %20 = vsyncpa [#allocation9], 0
    %s21 = scalar_lea.sflag [#allocation9], 1
    %22 = vsyncpa %s21, 0
    %23 = vsyncpa [#allocation12], 0
    %24 = vsyncpa [#allocation7], 0
    %s25 = scalar_lea.sflag [#allocation7], 1
    %26 = vsyncpa %s25, 0
    %27 = vsyncpa [#allocation16], 0
    %s28 = scalar_lea.sflag [#allocation16], 1
    %29 = vsyncpa %s28, 0
    loop: start=0, step=1, limit=6
    $region2: #{tpu_custom_call.1} parent=1 // loop_pre_header
      _
    $region3: #{tpu_custom_call.1} parent=1 // loop_header
      %s31 = sphi 0, %s35
      %p32 = scmp.ge.s32.totalorder %s31, 6
      %s38 = sphi 0, %s50
      %s39 = sphi 0, %s46
      %s40 = sphi 0, %s38
      %s41 = sphi 0, %s39
      %s42 = sphi 0, %s40
      %s43 = sphi 0, %s41
      %s55 = sphi 0, %s57
      %s58 = sphi 0, %s55
      %s59 = sphi 0, %s58
      %s75 = sphi 0, %s59
      %s81 = sphi 0, %s83
      %s84 = sphi 0, %s81
      %s85 = sphi 0, %s84
      %s101 = sphi 0, %s85
      %s107 = sphi 0, %s109
      %s110 = sphi 0, %s107
      %s111 = sphi 0, %s110
      %s127 = sphi 0, %s111
      %s133 = sphi 0, %s135
      %s136 = sphi 0, %s133
      %s137 = sphi 0, %s136
      %s153 = sphi 0, %s137
      %s157 = sphi 0, %s157
      %s159 = sphi 0, %s157
      %s160 = sphi 0, %s159
      %s174 = sphi 0, %s160
      %s178 = sphi 0, %s178
      %s180 = sphi 0, %s178
      %s181 = sphi 0, %s180
      %s195 = sphi 0, %s181
      %s199 = sphi 0, %s199
      %s201 = sphi 0, %s199
      %s202 = sphi 0, %s201
      %s216 = sphi 0, %s202
      %s220 = sphi 0, %s220
      %s222 = sphi 0, %s220
      %s223 = sphi 0, %s222
      %s237 = sphi 0, %s223
      %s241 = sphi 0, %s241
      %s243 = sphi 0, %s241
      %s244 = sphi 0, %s243
      %s258 = sphi 0, %s244
      %s264 = sphi 0, %s266
      %s267 = sphi 0, %s264
      %s268 = sphi 0, %s267
      %s284 = sphi 0, %s268
      %s290 = sphi 0, %s292
      %s293 = sphi 0, %s290
      %s294 = sphi 0, %s293
      %s310 = sphi 0, %s294
    $region4: #{tpu_custom_call.1} parent=1 // loop_header_branch
      %34 = sbr.rel (%p32) target = $region8
    $region5: #{tpu_custom_call.1} parent=1 // loop_body
      %s36 = ssub.s32 %s31, 1
      %s37 = ssub.s32 %s31, 2
      %s44 = sadd.s32 1, %s39
      %p45 = scmp.ge.s32.totalorder %s44, 2
      %s46 = scalar_select %p45, 0, %s44
      %s47 = sadd.s32 1, %s38
      %s48 = scalar_select %p45, %s47, %s38
      %p49 = scmp.ge.s32.totalorder %s48, 2
      %s50 = scalar_select %p49, 0, %s48
      %s51 = ssub.s32 %s38, %s50
      %s52 = ssub.s32 %s39, %s46
      %s53 = sor.u32 %s51, %s52
      %p54 = scmp.eq.s32.totalorder %s53, 0
      %s56 = sadd.s32 %s55, 1
      %s57 = scalar_select %p54, %s55, %s56
      %p60 = pneg %p54
      %p61 = scmp.eq.s32.totalorder %s31, 3
      %p62 = por %p60, %p61
      %p63 = scmp.ne.s32.totalorder %s55, %s58
      %p64 = scmp.eq.s32.totalorder %s31, 0
      %p65 = por %p63, %p64
      %p66 = scmp.ne.s32.totalorder %s55, %s58
      %p67 = scmp.eq.s32.totalorder %s36, 3
      %p68 = por %p66, %p67
      %p69 = scmp.ne.s32.totalorder %s58, %s59
      %p70 = scmp.eq.s32.totalorder %s36, 0
      %p71 = por %p69, %p70
      %p72 = scmp.ne.s32.totalorder %s58, %s59
      %p73 = scmp.eq.s32.totalorder %s37, 3
      %p74 = por %p72, %p73
      %p76 = scmp.ne.s32.totalorder %s59, %s75
      %p77 = scmp.eq.s32.totalorder %s37, 0
      %p78 = por %p76, %p77
      %s79 = ssub.s32 %s39, %s46
      %p80 = scmp.eq.s32.totalorder %s79, 0
      %s82 = sadd.s32 %s81, 1
      %s83 = scalar_select %p80, %s81, %s82
      %p86 = pneg %p80
      %p87 = scmp.eq.s32.totalorder %s31, 3
      %p88 = por %p86, %p87
      %p89 = scmp.ne.s32.totalorder %s81, %s84
      %p90 = scmp.eq.s32.totalorder %s31, 0
      %p91 = por %p89, %p90
      %p92 = scmp.ne.s32.totalorder %s81, %s84
      %p93 = scmp.eq.s32.totalorder %s36, 3
      %p94 = por %p92, %p93
      %p95 = scmp.ne.s32.totalorder %s84, %s85
      %p96 = scmp.eq.s32.totalorder %s36, 0
      %p97 = por %p95, %p96
      %p98 = scmp.ne.s32.totalorder %s84, %s85
      %p99 = scmp.eq.s32.totalorder %s37, 3
      %p100 = por %p98, %p99
      %p102 = scmp.ne.s32.totalorder %s85, %s101
      %p103 = scmp.eq.s32.totalorder %s37, 0
      %p104 = por %p102, %p103
      %s105 = ssub.s32 %s38, %s50
      %p106 = scmp.eq.s32.totalorder %s105, 0
      %s108 = sadd.s32 %s107, 1
      %s109 = scalar_select %p106, %s107, %s108
      %p112 = pneg %p106
      %p113 = scmp.eq.s32.totalorder %s31, 3
      %p114 = por %p112, %p113
      %p115 = scmp.ne.s32.totalorder %s107, %s110
      %p116 = scmp.eq.s32.totalorder %s31, 0
      %p117 = por %p115, %p116
      %p118 = scmp.ne.s32.totalorder %s107, %s110
      %p119 = scmp.eq.s32.totalorder %s36, 3
      %p120 = por %p118, %p119
      %p121 = scmp.ne.s32.totalorder %s110, %s111
      %p122 = scmp.eq.s32.totalorder %s36, 0
      %p123 = por %p121, %p122
      %p124 = scmp.ne.s32.totalorder %s110, %s111
      %p125 = scmp.eq.s32.totalorder %s37, 3
      %p126 = por %p124, %p125
      %p128 = scmp.ne.s32.totalorder %s111, %s127
      %p129 = scmp.eq.s32.totalorder %s37, 0
      %p130 = por %p128, %p129
      %s131 = ssub.s32 %s38, %s50
      %p132 = scmp.eq.s32.totalorder %s131, 0
      %s134 = sadd.s32 %s133, 1
      %s135 = scalar_select %p132, %s133, %s134
      %p138 = pneg %p132
      %p139 = scmp.eq.s32.totalorder %s31, 3
      %p140 = por %p138, %p139
      %p141 = scmp.ne.s32.totalorder %s133, %s136
      %p142 = scmp.eq.s32.totalorder %s31, 0
      %p143 = por %p141, %p142
      %p144 = scmp.ne.s32.totalorder %s133, %s136
      %p145 = scmp.eq.s32.totalorder %s36, 3
      %p146 = por %p144, %p145
      %p147 = scmp.ne.s32.totalorder %s136, %s137
      %p148 = scmp.eq.s32.totalorder %s36, 0
      %p149 = por %p147, %p148
      %p150 = scmp.ne.s32.totalorder %s136, %s137
      %p151 = scmp.eq.s32.totalorder %s37, 3
      %p152 = por %p150, %p151
      %p154 = scmp.ne.s32.totalorder %s137, %s153
      %p155 = scmp.eq.s32.totalorder %s37, 0
      %p156 = por %p154, %p155
      %s158 = sadd.s32 %s157, 1
      %p161 = scmp.eq.s32.totalorder %s31, 3
      %p162 = scmp.ne.s32.totalorder %s157, %s159
      %p163 = scmp.eq.s32.totalorder %s31, 0
      %p164 = por %p162, %p163
      %p165 = scmp.ne.s32.totalorder %s157, %s159
      %p166 = scmp.eq.s32.totalorder %s36, 3
      %p167 = por %p165, %p166
      %p168 = scmp.ne.s32.totalorder %s159, %s160
      %p169 = scmp.eq.s32.totalorder %s36, 0
      %p170 = por %p168, %p169
      %p171 = scmp.ne.s32.totalorder %s159, %s160
      %p172 = scmp.eq.s32.totalorder %s37, 3
      %p173 = por %p171, %p172
      %p175 = scmp.ne.s32.totalorder %s160, %s174
      %p176 = scmp.eq.s32.totalorder %s37, 0
      %p177 = por %p175, %p176
      %s179 = sadd.s32 %s178, 1
      %p182 = scmp.eq.s32.totalorder %s31, 3
      %p183 = scmp.ne.s32.totalorder %s178, %s180
      %p184 = scmp.eq.s32.totalorder %s31, 0
      %p185 = por %p183, %p184
      %p186 = scmp.ne.s32.totalorder %s178, %s180
      %p187 = scmp.eq.s32.totalorder %s36, 3
      %p188 = por %p186, %p187
      %p189 = scmp.ne.s32.totalorder %s180, %s181
      %p190 = scmp.eq.s32.totalorder %s36, 0
      %p191 = por %p189, %p190
      %p192 = scmp.ne.s32.totalorder %s180, %s181
      %p193 = scmp.eq.s32.totalorder %s37, 3
      %p194 = por %p192, %p193
      %p196 = scmp.ne.s32.totalorder %s181, %s195
      %p197 = scmp.eq.s32.totalorder %s37, 0
      %p198 = por %p196, %p197
      %s200 = sadd.s32 %s199, 1
      %p203 = scmp.eq.s32.totalorder %s31, 3
      %p204 = scmp.ne.s32.totalorder %s199, %s201
      %p205 = scmp.eq.s32.totalorder %s31, 0
      %p206 = por %p204, %p205
      %p207 = scmp.ne.s32.totalorder %s199, %s201
      %p208 = scmp.eq.s32.totalorder %s36, 3
      %p209 = por %p207, %p208
      %p210 = scmp.ne.s32.totalorder %s201, %s202
      %p211 = scmp.eq.s32.totalorder %s36, 0
      %p212 = por %p210, %p211
      %p213 = scmp.ne.s32.totalorder %s201, %s202
      %p214 = scmp.eq.s32.totalorder %s37, 3
      %p215 = por %p213, %p214
      %p217 = scmp.ne.s32.totalorder %s202, %s216
      %p218 = scmp.eq.s32.totalorder %s37, 0
      %p219 = por %p217, %p218
      %s221 = sadd.s32 %s220, 1
      %p224 = scmp.eq.s32.totalorder %s31, 3
      %p225 = scmp.ne.s32.totalorder %s220, %s222
      %p226 = scmp.eq.s32.totalorder %s31, 0
      %p227 = por %p225, %p226
      %p228 = scmp.ne.s32.totalorder %s220, %s222
      %p229 = scmp.eq.s32.totalorder %s36, 3
      %p230 = por %p228, %p229
      %p231 = scmp.ne.s32.totalorder %s222, %s223
      %p232 = scmp.eq.s32.totalorder %s36, 0
      %p233 = por %p231, %p232
      %p234 = scmp.ne.s32.totalorder %s222, %s223
      %p235 = scmp.eq.s32.totalorder %s37, 3
      %p236 = por %p234, %p235
      %p238 = scmp.ne.s32.totalorder %s223, %s237
      %p239 = scmp.eq.s32.totalorder %s37, 0
      %p240 = por %p238, %p239
      %s242 = sadd.s32 %s241, 1
      %p245 = scmp.eq.s32.totalorder %s31, 3
      %p246 = scmp.ne.s32.totalorder %s241, %s243
      %p247 = scmp.eq.s32.totalorder %s31, 0
      %p248 = por %p246, %p247
      %p249 = scmp.ne.s32.totalorder %s241, %s243
      %p250 = scmp.eq.s32.totalorder %s36, 3
      %p251 = por %p249, %p250
      %p252 = scmp.ne.s32.totalorder %s243, %s244
      %p253 = scmp.eq.s32.totalorder %s36, 0
      %p254 = por %p252, %p253
      %p255 = scmp.ne.s32.totalorder %s243, %s244
      %p256 = scmp.eq.s32.totalorder %s37, 3
      %p257 = por %p255, %p256
      %p259 = scmp.ne.s32.totalorder %s244, %s258
      %p260 = scmp.eq.s32.totalorder %s37, 0
      %p261 = por %p259, %p260
      %s262 = ssub.s32 %s38, %s50
      %p263 = scmp.eq.s32.totalorder %s262, 0
      %s265 = sadd.s32 %s264, 1
      %s266 = scalar_select %p263, %s264, %s265
      %p269 = pneg %p263
      %p270 = scmp.eq.s32.totalorder %s31, 3
      %p271 = por %p269, %p270
      %p272 = scmp.ne.s32.totalorder %s264, %s267
      %p273 = scmp.eq.s32.totalorder %s31, 0
      %p274 = por %p272, %p273
      %p275 = scmp.ne.s32.totalorder %s264, %s267
      %p276 = scmp.eq.s32.totalorder %s36, 3
      %p277 = por %p275, %p276
      %p278 = scmp.ne.s32.totalorder %s267, %s268
      %p279 = scmp.eq.s32.totalorder %s36, 0
      %p280 = por %p278, %p279
      %p281 = scmp.ne.s32.totalorder %s267, %s268
      %p282 = scmp.eq.s32.totalorder %s37, 3
      %p283 = por %p281, %p282
      %p285 = scmp.ne.s32.totalorder %s268, %s284
      %p286 = scmp.eq.s32.totalorder %s37, 0
      %p287 = por %p285, %p286
      %s288 = ssub.s32 %s38, %s50
      %p289 = scmp.eq.s32.totalorder %s288, 0
      %s291 = sadd.s32 %s290, 1
      %s292 = scalar_select %p289, %s290, %s291
      %p295 = pneg %p289
      %p296 = scmp.eq.s32.totalorder %s31, 3
      %p297 = por %p295, %p296
      %p298 = scmp.ne.s32.totalorder %s290, %s293
      %p299 = scmp.eq.s32.totalorder %s31, 0
      %p300 = por %p298, %p299
      %p301 = scmp.ne.s32.totalorder %s290, %s293
      %p302 = scmp.eq.s32.totalorder %s36, 3
      %p303 = por %p301, %p302
      %p304 = scmp.ne.s32.totalorder %s293, %s294
      %p305 = scmp.eq.s32.totalorder %s36, 0
      %p306 = por %p304, %p305
      %p307 = scmp.ne.s32.totalorder %s293, %s294
      %p308 = scmp.eq.s32.totalorder %s37, 3
      %p309 = por %p307, %p308
      %p311 = scmp.ne.s32.totalorder %s294, %s310
      %p312 = scmp.eq.s32.totalorder %s37, 0
      %p313 = por %p311, %p312
      %p314 = scmp.le.s32.totalorder 1, %s31
      %p315 = scmp.lt.s32.totalorder %s31, 5
      %p316 = pnand %p314, %p315
      %p317 = pneg %p316
      // Predicated region
      $region9: #{tpu_custom_call.1} parent=5 // pred_check
        _
      $region10: #{tpu_custom_call.1} parent=5 // pred_check_branch
        %319 = sbr.rel (%p316) target = $region12
      $region11: #{tpu_custom_call.1} parent=5 // pred_region
        %s320 = ssub.s32 %s31, 1
        // Predicated region
        $region13: #{tpu_custom_call.1} parent=11 // pred_check
          %p321 = pneg %p170
        $region14: #{tpu_custom_call.1} parent=11 // pred_check_branch
          %323 = sbr.rel (%p321) target = $region16
        $region15: #{tpu_custom_call.1} parent=11 // pred_region
          %325 = vsyncadd [#allocation9], 0
          %s326 = sshll.u32 %s4, 4
          %s327 = int_to_ptr.hbm [resolvable:$true] %s326
          %s328 = sshll.u32 [#allocation10], 4
          %s329 = int_to_ptr.vmem [resolvable:$true] %s328
          %334 = dma.hbm_to_vmem [thread:$0]  %s327, 2048, %s329, [#allocation9], 64, 64, 4
        $region16: #{tpu_custom_call.1} parent=11 // pred_fallthru
          _
        // Predicated region
        $region17: #{tpu_custom_call.1} parent=11 // pred_check
          %p335 = pneg %p191
        $region18: #{tpu_custom_call.1} parent=11 // pred_check_branch
          %337 = sbr.rel (%p335) target = $region20
        $region19: #{tpu_custom_call.1} parent=11 // pred_region
          _
        $region20: #{tpu_custom_call.1} parent=11 // pred_fallthru
          _
        // Predicated region
        $region21: #{tpu_custom_call.1} parent=11 // pred_check
          %p338 = pneg %p212
        $region22: #{tpu_custom_call.1} parent=11 // pred_check_branch
          %340 = sbr.rel (%p338) target = $region24
        $region23: #{tpu_custom_call.1} parent=11 // pred_region
          %342 = vsyncadd [#allocation12], 0
          %s343 = sshll.u32 %s6, 4
          %s344 = int_to_ptr.hbm [resolvable:$true] %s343
          %s345 = sshll.u32 [#allocation11], 4
          %s346 = int_to_ptr.vmem [resolvable:$true] %s345
          %351 = dma.hbm_to_vmem [thread:$0]  %s344, 1024, %s346, [#allocation12], 64, 64, 4
        $region24: #{tpu_custom_call.1} parent=11 // pred_fallthru
          _
        // Predicated region
        $region25: #{tpu_custom_call.1} parent=11 // pred_check
          %p352 = pneg %p233
        $region26: #{tpu_custom_call.1} parent=11 // pred_check_branch
          %354 = sbr.rel (%p352) target = $region28
        $region27: #{tpu_custom_call.1} parent=11 // pred_region
          %356 = vsyncadd [#allocation12], 0
          %s357 = sshll.u32 %s7, 4
          %s358 = int_to_ptr.hbm [resolvable:$true] %s357
          %s359 = sshll.u32 [#allocation13], 4
          %s360 = int_to_ptr.vmem [resolvable:$true] %s359
          %365 = dma.hbm_to_vmem [thread:$0]  %s358, 1024, %s360, [#allocation12], 64, 64, 4
        $region28: #{tpu_custom_call.1} parent=11 // pred_fallthru
          _
        // Predicated region
        $region29: #{tpu_custom_call.1} parent=11 // pred_check
          %p366 = pneg %p254
        $region30: #{tpu_custom_call.1} parent=11 // pred_check_branch
          %368 = sbr.rel (%p366) target = $region32
        $region31: #{tpu_custom_call.1} parent=11 // pred_region
          _
        $region32: #{tpu_custom_call.1} parent=11 // pred_fallthru
          _
      $region12: #{tpu_custom_call.1} parent=5 // pred_fallthru
        _
      %p369 = scmp.lt.s32.totalorder %s31, 4
      // Predicated region
      $region33: #{tpu_custom_call.1} parent=5 // pred_check
        %p370 = pneg %p369
      $region34: #{tpu_custom_call.1} parent=5 // pred_check_branch
        %372 = sbr.rel (%p370) target = $region36
      $region35: #{tpu_custom_call.1} parent=5 // pred_region
        // Predicated region
        $region37: #{tpu_custom_call.1} parent=35 // pred_check
          %p373 = pneg %p65
        $region38: #{tpu_custom_call.1} parent=35 // pred_check_branch
          %375 = sbr.rel (%p373) target = $region40
        $region39: #{tpu_custom_call.1} parent=35 // pred_region
          %s376 = sand.u32 %s55, 1
          %s377 = sand.u32 %s55, 1
          %s378 = smul.addr %s377, 128
          %s379 = scalar_lea.vmem [#allocation4], %s378
          %s380 = smul.u32 8, %s38
          %s381 = smul.u32 2, %s39
          %s382 = smul.addr %s380, 4
          %s383 = sadd.s32 %s381, %s382
          %s384 = smul.addr %s383, 8
          %s385 = scalar_lea.vmem %s0, %s384
          // Predicated region
          $region41: #{tpu_custom_call.1} parent=39 // pred_check
            _
          $region42: #{tpu_custom_call.1} parent=39 // pred_check_branch
            %387 = sbr.rel (0) target = $region44
          $region43: #{tpu_custom_call.1} parent=39 // pred_region
            // Predicated region
            $region45: #{tpu_custom_call.1} parent=43 // pred_check
              _
            $region46: #{tpu_custom_call.1} parent=43 // pred_check_branch
              %389 = sbr.rel (0) target = $region48
            $region47: #{tpu_custom_call.1} parent=43 // pred_region
              loop: start=0, step=1, limit=1
              $region49: #{tpu_custom_call.1} parent=47 // loop_pre_header
                _
              $region50: #{tpu_custom_call.1} parent=47 // loop_header
                %s391 = sphi 0, %s395
                %p392 = scmp.ge.s32.totalorder %s391, 1
                %s396 = sphi %s385, %s385
                %s397 = sphi %s379, %s379
              $region51: #{tpu_custom_call.1} parent=47 // loop_header_branch
                %394 = sbr.rel (%p392) target = $region55
              $region52: #{tpu_custom_call.1} parent=47 // loop_body
                %v398 = vld [vmem:[%s396] sm:$0xff]
                %399 = vst [vmem:[%s397] sm:$0xff] %v398
                %v400 = vld [vmem:[%s396 + $0x8] sm:$0xff]
                %401 = vst [vmem:[%s397 + $0x8] sm:$0xff] %v400
                %v402 = vld [vmem:[%s396 + $0x20] sm:$0xff]
                %403 = vst [vmem:[%s397 + $0x10] sm:$0xff] %v402
                %v404 = vld [vmem:[%s396 + $0x28] sm:$0xff]
                %405 = vst [vmem:[%s397 + $0x18] sm:$0xff] %v404
                %v406 = vld [vmem:[%s396 + $0x40] sm:$0xff]
                %407 = vst [vmem:[%s397 + $0x20] sm:$0xff] %v406
                %v408 = vld [vmem:[%s396 + $0x48] sm:$0xff]
                %409 = vst [vmem:[%s397 + $0x28] sm:$0xff] %v408
                %v410 = vld [vmem:[%s396 + $0x60] sm:$0xff]
                %411 = vst [vmem:[%s397 + $0x30] sm:$0xff] %v410
                %v412 = vld [vmem:[%s396 + $0x68] sm:$0xff]
                %413 = vst [vmem:[%s397 + $0x38] sm:$0xff] %v412
                %v414 = vld [vmem:[%s396 + $0x80] sm:$0xff]
                %415 = vst [vmem:[%s397 + $0x40] sm:$0xff] %v414
                %v416 = vld [vmem:[%s396 + $0x88] sm:$0xff]
                %417 = vst [vmem:[%s397 + $0x48] sm:$0xff] %v416
                %v418 = vld [vmem:[%s396 + $0xa0] sm:$0xff]
                %419 = vst [vmem:[%s397 + $0x50] sm:$0xff] %v418
                %v420 = vld [vmem:[%s396 + $0xa8] sm:$0xff]
                %421 = vst [vmem:[%s397 + $0x58] sm:$0xff] %v420
                %v422 = vld [vmem:[%s396 + $0xc0] sm:$0xff]
                %423 = vst [vmem:[%s397 + $0x60] sm:$0xff] %v422
                %v424 = vld [vmem:[%s396 + $0xc8] sm:$0xff]
                %425 = vst [vmem:[%s397 + $0x68] sm:$0xff] %v424
                %v426 = vld [vmem:[%s396 + $0xe0] sm:$0xff]
                %427 = vst [vmem:[%s397 + $0x70] sm:$0xff] %v426
                %v428 = vld [vmem:[%s396 + $0xe8] sm:$0xff]
                %429 = vst [vmem:[%s397 + $0x78] sm:$0xff] %v428
              $region53: #{tpu_custom_call.1} parent=47 // loop_footer
                %s395 = sadd.s32 1, %s391
              $region54: #{tpu_custom_call.1} parent=47 // loop_footer_branch
                %390 = sbr.rel target = $region50
              $region55: #{tpu_custom_call.1} parent=47 // loop_exit
                _
            $region48: #{tpu_custom_call.1} parent=43 // pred_fallthru
              _
            // Predicated region
            $region56: #{tpu_custom_call.1} parent=43 // pred_check
              _
            $region57: #{tpu_custom_call.1} parent=43 // pred_check_branch
              %431 = sbr.rel target = $region59
            $region58: #{tpu_custom_call.1} parent=43 // pred_region
              _
            $region59: #{tpu_custom_call.1} parent=43 // pred_fallthru
              _
          $region44: #{tpu_custom_call.1} parent=39 // pred_fallthru
            _
          %432 = vnop
        $region40: #{tpu_custom_call.1} parent=35 // pred_fallthru
          _
        // Predicated region
        $region60: #{tpu_custom_call.1} parent=35 // pred_check
          %p433 = pneg %p91
        $region61: #{tpu_custom_call.1} parent=35 // pred_check_branch
          %435 = sbr.rel (%p433) target = $region63
        $region62: #{tpu_custom_call.1} parent=35 // pred_region
          %s436 = sand.u32 %s81, 1
          %s437 = scalar_lea.sflag [#allocation6], %s436
          %s438 = sand.u32 %s81, 1
          %s439 = smul.addr %s438, 128
          %s440 = scalar_lea.vmem [#allocation5], %s439
          %s441 = smul.u32 32, %s39
          %443 = vsyncadd %s437, 0
          %s444 = smul.addr %s441, 4
          %s445 = scalar_lea.hbm %s1, %s444
          %s446 = sshll.u32 %s445, 4
          %s447 = int_to_ptr.hbm [resolvable:$true] %s446
          %s448 = sshll.u32 %s440, 4
          %s449 = int_to_ptr.vmem [resolvable:$true] %s448
          %454 = dma.hbm_to_vmem [thread:$0]  %s447, 2048, %s449, %s437, 64, 64, 4
        $region63: #{tpu_custom_call.1} parent=35 // pred_fallthru
          _
        // Predicated region
        $region64: #{tpu_custom_call.1} parent=35 // pred_check
          %p455 = pneg %p117
        $region65: #{tpu_custom_call.1} parent=35 // pred_check_branch
          %457 = sbr.rel (%p455) target = $region67
        $region66: #{tpu_custom_call.1} parent=35 // pred_region
          %s458 = sand.u32 %s31, 1
          %s459 = scalar_lea.sflag [#allocation9], %s458
          %s460 = sand.u32 %s107, 1
          %s461 = smul.addr %s460, 128
          %s462 = scalar_lea.vmem [#allocation8], %s461
          %s463 = smul.u32 32, %s38
          %465 = vsyncadd %s459, 0
          %s466 = smul.addr %s463, 4
          %s467 = scalar_lea.hbm %s2, %s466
          %s468 = sshll.u32 %s467, 4
          %s469 = int_to_ptr.hbm [resolvable:$true] %s468
          %s470 = sshll.u32 %s462, 4
          %s471 = int_to_ptr.vmem [resolvable:$true] %s470
          %476 = dma.hbm_to_vmem [thread:$0]  %s469, 2048, %s471, %s459, 64, 64, 4
        $region67: #{tpu_custom_call.1} parent=35 // pred_fallthru
          _
        // Predicated region
        $region68: #{tpu_custom_call.1} parent=35 // pred_check
          %p477 = pneg %p143
        $region69: #{tpu_custom_call.1} parent=35 // pred_check_branch
          %479 = sbr.rel (%p477) target = $region71
        $region70: #{tpu_custom_call.1} parent=35 // pred_region
          %s480 = smul.u32 32, %s38
          %p481 = scmp.lt.s32.totalorder %s480, 63
          %s482 = scalar_select %p481, %s480, 63
          %s483 = smul.addr %s482, 8
          %s484 = scalar_lea.vmem %s3, %s483
          %s485 = smul.u32 32, %s38
        $region71: #{tpu_custom_call.1} parent=35 // pred_fallthru
          _
      $region36: #{tpu_custom_call.1} parent=5 // pred_fallthru
        _
      %p486 = scmp.le.s32.totalorder 1, %s31
      %p487 = scmp.lt.s32.totalorder %s31, 5
      %p488 = pnand %p486, %p487
      %p489 = pneg %p488
      // Predicated region
      $region72: #{tpu_custom_call.1} parent=5 // pred_check
        _
      $region73: #{tpu_custom_call.1} parent=5 // pred_check_branch
        %491 = sbr.rel (%p488) target = $region75
      $region74: #{tpu_custom_call.1} parent=5 // pred_region
        %s492 = ssub.s32 %s31, 1
        %s493 = sand.u32 %s58, 1
        %s494 = sand.u32 %s58, 1
        %s495 = smul.addr %s494, 128
        %s496 = scalar_lea.vmem [#allocation4], %s495
        // Predicated region
        $region76: #{tpu_custom_call.1} parent=74 // pred_check
          %p497 = pneg %p71
        $region77: #{tpu_custom_call.1} parent=74 // pred_check_branch
          %499 = sbr.rel (%p497) target = $region79
        $region78: #{tpu_custom_call.1} parent=74 // pred_region
          _
        $region79: #{tpu_custom_call.1} parent=74 // pred_fallthru
          _
        %s500 = sand.u32 %s84, 1
        %s501 = scalar_lea.sflag [#allocation6], %s500
        %s502 = sand.u32 %s84, 1
        %s503 = smul.addr %s502, 128
        %s504 = scalar_lea.vmem [#allocation5], %s503
        // Predicated region
        $region80: #{tpu_custom_call.1} parent=74 // pred_check
          %p505 = pneg %p97
        $region81: #{tpu_custom_call.1} parent=74 // pred_check_branch
          %507 = sbr.rel (%p505) target = $region83
        $region82: #{tpu_custom_call.1} parent=74 // pred_region
          %509 = dma.done %s501, 2048
        $region83: #{tpu_custom_call.1} parent=74 // pred_fallthru
          _
        %s510 = sand.u32 %s36, 1
        %s511 = scalar_lea.sflag [#allocation9], %s510
        %s512 = sand.u32 %s110, 1
        %s513 = smul.addr %s512, 128
        %s514 = scalar_lea.vmem [#allocation8], %s513
        // Predicated region
        $region84: #{tpu_custom_call.1} parent=74 // pred_check
          %p515 = pneg %p123
        $region85: #{tpu_custom_call.1} parent=74 // pred_check_branch
          %517 = sbr.rel (%p515) target = $region87
        $region86: #{tpu_custom_call.1} parent=74 // pred_region
          %519 = dma.done %s511, 2048
        $region87: #{tpu_custom_call.1} parent=74 // pred_fallthru
          _
        // Predicated region
        $region88: #{tpu_custom_call.1} parent=74 // pred_check
          %p520 = pneg %p170
        $region89: #{tpu_custom_call.1} parent=74 // pred_check_branch
          %522 = sbr.rel (%p520) target = $region91
        $region90: #{tpu_custom_call.1} parent=74 // pred_region
          %524 = dma.done [#allocation9], 2048
        $region91: #{tpu_custom_call.1} parent=74 // pred_fallthru
          _
        // Predicated region
        $region92: #{tpu_custom_call.1} parent=74 // pred_check
          %p525 = pneg %p212
        $region93: #{tpu_custom_call.1} parent=74 // pred_check_branch
          %527 = sbr.rel (%p525) target = $region95
        $region94: #{tpu_custom_call.1} parent=74 // pred_region
          %529 = dma.done [#allocation12], 1024
        $region95: #{tpu_custom_call.1} parent=74 // pred_fallthru
          _
        // Predicated region
        $region96: #{tpu_custom_call.1} parent=74 // pred_check
          %p530 = pneg %p233
        $region97: #{tpu_custom_call.1} parent=74 // pred_check_branch
          %532 = sbr.rel (%p530) target = $region99
        $region98: #{tpu_custom_call.1} parent=74 // pred_region
          %534 = dma.done [#allocation12], 1024
        $region99: #{tpu_custom_call.1} parent=74 // pred_fallthru
          _
        %s535 = sand.u32 %s58, 1
        %s536 = sand.u32 %s58, 1
        %s537 = smul.addr %s536, 128
        %s538 = scalar_lea.vmem [#allocation4], %s537
        %p539 = pneg %p71
        %p540 = pneg %p68
        %s541 = sand.u32 %s84, 1
        %s542 = scalar_lea.sflag [#allocation6], %s541
        %s543 = sand.u32 %s84, 1
        %s544 = smul.addr %s543, 128
        %s545 = scalar_lea.vmem [#allocation5], %s544
        %p546 = pneg %p97
        %p547 = pneg %p94
        %s548 = sand.u32 %s36, 1
        %s549 = scalar_lea.sflag [#allocation9], %s548
        %s550 = sand.u32 %s110, 1
        %s551 = smul.addr %s550, 128
        %s552 = scalar_lea.vmem [#allocation8], %s551
        %p553 = pneg %p123
        %p554 = pneg %p120
        %s555 = smul.u32 32, %s40
        %p556 = scmp.lt.s32.totalorder %s555, 63
        %s557 = scalar_select %p556, %s555, 63
        %s558 = smul.addr %s557, 8
        %s559 = scalar_lea.vmem %s3, %s558
        %p560 = pneg %p149
        %p561 = pneg %p146
        %p562 = pneg %p170
        %p563 = pneg %p167
        %p564 = pneg %p191
        %p565 = pneg %p188
        %p566 = pneg %p212
        %p567 = pneg %p209
        %p568 = pneg %p233
        %p569 = pneg %p230
        %p570 = pneg %p254
        %p571 = pneg %p251
        %p572 = pneg %p280
        %p573 = pneg %p277
        %s574 = sand.u32 %s267, 1
        %s575 = scalar_lea.sflag [#allocation7], %s574
        %s576 = sand.u32 %s267, 1
        %s577 = smul.addr %s576, 128
        %s578 = scalar_lea.vmem [#allocation14], %s577
        %p579 = pneg %p306
        %p580 = pneg %p303
        %s581 = sand.u32 %s293, 1
        %s582 = scalar_lea.sflag [#allocation16], %s581
        %s583 = sand.u32 %s293, 1
        %s584 = smul.addr %s583, 128
        %s585 = scalar_lea.vmem [#allocation15], %s584
        %s586 = smul.u32 8, %s40
        %s587 = smul.u32 2, %s41
        %s588 = smul.u32 32, %s41
        %s589 = smul.u32 32, %s40
        %s590 = smul.u32 32, %s40
        %p591 = scmp.lt.s32.totalorder %s590, 63
        %s592 = scalar_select %p591, %s590, 63
        %s593 = smul.addr %s592, 8
        %s594 = scalar_lea.vmem %s3, %s593
        %s595 = smul.u32 32, %s40
        %s596 = smul.u32 32, %s40
        %s597 = smul.u32 32, %s40
        %p598 = scmp.eq.s32.totalorder %s41, 0
        // Predicated region
        $region100: #{tpu_custom_call.1} parent=74 // pred_check
          %p599 = pneg %p598
        $region101: #{tpu_custom_call.1} parent=74 // pred_check_branch
          %601 = sbr.rel (%p599) target = $region103
        $region102: #{tpu_custom_call.1} parent=74 // pred_region
          %602 = vst [vmem:[#allocation2] sm:$0xff] 0.0
          %603 = vst [vmem:[#allocation2 + $0x8] sm:$0xff] 0.0
          %604 = vst [vmem:[#allocation2 + $0x10] sm:$0xff] 0.0
          %605 = vst [vmem:[#allocation2 + $0x18] sm:$0xff] 0.0
          %606 = vst [vmem:[#allocation2 + $0x20] sm:$0xff] 0.0
          %607 = vst [vmem:[#allocation2 + $0x28] sm:$0xff] 0.0
          %608 = vst [vmem:[#allocation2 + $0x30] sm:$0xff] 0.0
          %609 = vst [vmem:[#allocation2 + $0x38] sm:$0xff] 0.0
          %610 = vst [vmem:[#allocation2 + $0x40] sm:$0xff] 0.0
          %611 = vst [vmem:[#allocation2 + $0x48] sm:$0xff] 0.0
          %612 = vst [vmem:[#allocation2 + $0x50] sm:$0xff] 0.0
          %613 = vst [vmem:[#allocation2 + $0x58] sm:$0xff] 0.0
          %614 = vst [vmem:[#allocation2 + $0x60] sm:$0xff] 0.0
          %615 = vst [vmem:[#allocation2 + $0x68] sm:$0xff] 0.0
          %616 = vst [vmem:[#allocation2 + $0x70] sm:$0xff] 0.0
          %617 = vst [vmem:[#allocation2 + $0x78] sm:$0xff] 0.0
          %618 = vst [vmem:[#allocation2 + $0x80] sm:$0xff] 0.0
          %619 = vst [vmem:[#allocation2 + $0x88] sm:$0xff] 0.0
          %620 = vst [vmem:[#allocation2 + $0x90] sm:$0xff] 0.0
          %621 = vst [vmem:[#allocation2 + $0x98] sm:$0xff] 0.0
          %622 = vst [vmem:[#allocation2 + $0xa0] sm:$0xff] 0.0
          %623 = vst [vmem:[#allocation2 + $0xa8] sm:$0xff] 0.0
          %624 = vst [vmem:[#allocation2 + $0xb0] sm:$0xff] 0.0
          %625 = vst [vmem:[#allocation2 + $0xb8] sm:$0xff] 0.0
          %626 = vst [vmem:[#allocation2 + $0xc0] sm:$0xff] 0.0
          %627 = vst [vmem:[#allocation2 + $0xc8] sm:$0xff] 0.0
          %628 = vst [vmem:[#allocation2 + $0xd0] sm:$0xff] 0.0
          %629 = vst [vmem:[#allocation2 + $0xd8] sm:$0xff] 0.0
          %630 = vst [vmem:[#allocation2 + $0xe0] sm:$0xff] 0.0
          %631 = vst [vmem:[#allocation2 + $0xe8] sm:$0xff] 0.0
          %632 = vst [vmem:[#allocation2 + $0xf0] sm:$0xff] 0.0
          %633 = vst [vmem:[#allocation2 + $0xf8] sm:$0xff] 0.0
        $region103: #{tpu_custom_call.1} parent=74 // pred_fallthru
          _
        %v634 = vld [vmem:[#allocation2] sm:$0xff]
        %v635 = vld [vmem:[#allocation2 + $0x8] sm:$0xff]
        %v636 = vld [vmem:[#allocation2 + $0x10] sm:$0xff]
        %v637 = vld [vmem:[#allocation2 + $0x18] sm:$0xff]
        %v638 = vld [vmem:[#allocation2 + $0x20] sm:$0xff]
        %v639 = vld [vmem:[#allocation2 + $0x28] sm:$0xff]
        %v640 = vld [vmem:[#allocation2 + $0x30] sm:$0xff]
        %v641 = vld [vmem:[#allocation2 + $0x38] sm:$0xff]
        %v642 = vld [vmem:[#allocation2 + $0x40] sm:$0xff]
        %v643 = vld [vmem:[#allocation2 + $0x48] sm:$0xff]
        %v644 = vld [vmem:[#allocation2 + $0x50] sm:$0xff]
        %v645 = vld [vmem:[#allocation2 + $0x58] sm:$0xff]
        %v646 = vld [vmem:[#allocation2 + $0x60] sm:$0xff]
        %v647 = vld [vmem:[#allocation2 + $0x68] sm:$0xff]
        %v648 = vld [vmem:[#allocation2 + $0x70] sm:$0xff]
        %v649 = vld [vmem:[#allocation2 + $0x78] sm:$0xff]
        %v650 = vld [vmem:[#allocation2 + $0x80] sm:$0xff]
        %v651 = vld [vmem:[#allocation2 + $0x88] sm:$0xff]
        %v652 = vld [vmem:[#allocation2 + $0x90] sm:$0xff]
        %v653 = vld [vmem:[#allocation2 + $0x98] sm:$0xff]
        %v654 = vld [vmem:[#allocation2 + $0xa0] sm:$0xff]
        %v655 = vld [vmem:[#allocation2 + $0xa8] sm:$0xff]
        %v656 = vld [vmem:[#allocation2 + $0xb0] sm:$0xff]
        %v657 = vld [vmem:[#allocation2 + $0xb8] sm:$0xff]
        %v658 = vld [vmem:[#allocation2 + $0xc0] sm:$0xff]
        %v659 = vld [vmem:[#allocation2 + $0xc8] sm:$0xff]
        %v660 = vld [vmem:[#allocation2 + $0xd0] sm:$0xff]
        %v661 = vld [vmem:[#allocation2 + $0xd8] sm:$0xff]
        %v662 = vld [vmem:[#allocation2 + $0xe0] sm:$0xff]
        %v663 = vld [vmem:[#allocation2 + $0xe8] sm:$0xff]
        %v664 = vld [vmem:[#allocation2 + $0xf0] sm:$0xff]
        %v665 = vld [vmem:[#allocation2 + $0xf8] sm:$0xff]
        %v666 = vld [vmem:[%s496] sm:$0xff]
        %v667 = vld [vmem:[%s496 + $0x8] sm:$0xff]
        %v668 = vld [vmem:[%s496 + $0x10] sm:$0xff]
        %v669 = vld [vmem:[%s496 + $0x18] sm:$0xff]
        %v670 = vld [vmem:[%s496 + $0x20] sm:$0xff]
        %v671 = vld [vmem:[%s496 + $0x28] sm:$0xff]
        %v672 = vld [vmem:[%s496 + $0x30] sm:$0xff]
        %v673 = vld [vmem:[%s496 + $0x38] sm:$0xff]
        %v674 = vld [vmem:[%s496 + $0x40] sm:$0xff]
        %v675 = vld [vmem:[%s496 + $0x48] sm:$0xff]
        %v676 = vld [vmem:[%s496 + $0x50] sm:$0xff]
        %v677 = vld [vmem:[%s496 + $0x58] sm:$0xff]
        %v678 = vld [vmem:[%s496 + $0x60] sm:$0xff]
        %v679 = vld [vmem:[%s496 + $0x68] sm:$0xff]
        %v680 = vld [vmem:[%s496 + $0x70] sm:$0xff]
        %v681 = vld [vmem:[%s496 + $0x78] sm:$0xff]
        %v682 = vunpack.c.0.s8 %v666
        %v683 = vunpack.c.0.s8 %v667
        %v684 = vunpack.c.1.s8 %v666
        %v685 = vunpack.c.1.s8 %v667
        %v686 = vunpack.c.2.s8 %v666
        %v687 = vunpack.c.2.s8 %v667
        %v688 = vunpack.c.3.s8 %v666
        %v689 = vunpack.c.3.s8 %v667
        %v690 = vunpack.c.0.s8 %v668
        %v691 = vunpack.c.0.s8 %v669
        %v692 = vunpack.c.1.s8 %v668
        %v693 = vunpack.c.1.s8 %v669
        %v694 = vunpack.c.2.s8 %v668
        %v695 = vunpack.c.2.s8 %v669
        %v696 = vunpack.c.3.s8 %v668
        %v697 = vunpack.c.3.s8 %v669
        %v698 = vunpack.c.0.s8 %v670
        %v699 = vunpack.c.0.s8 %v671
        %v700 = vunpack.c.1.s8 %v670
        %v701 = vunpack.c.1.s8 %v671
        %v702 = vunpack.c.2.s8 %v670
        %v703 = vunpack.c.2.s8 %v671
        %v704 = vunpack.c.3.s8 %v670
        %v705 = vunpack.c.3.s8 %v671
        %v706 = vunpack.c.0.s8 %v672
        %v707 = vunpack.c.0.s8 %v673
        %v708 = vunpack.c.1.s8 %v672
        %v709 = vunpack.c.1.s8 %v673
        %v710 = vunpack.c.2.s8 %v672
        %v711 = vunpack.c.2.s8 %v673
        %v712 = vunpack.c.3.s8 %v672
        %v713 = vunpack.c.3.s8 %v673
        %v714 = vunpack.c.0.s8 %v674
        %v715 = vunpack.c.0.s8 %v675
        %v716 = vunpack.c.1.s8 %v674
        %v717 = vunpack.c.1.s8 %v675
        %v718 = vunpack.c.2.s8 %v674
        %v719 = vunpack.c.2.s8 %v675
        %v720 = vunpack.c.3.s8 %v674
        %v721 = vunpack.c.3.s8 %v675
        %v722 = vunpack.c.0.s8 %v676
        %v723 = vunpack.c.0.s8 %v677
        %v724 = vunpack.c.1.s8 %v676
        %v725 = vunpack.c.1.s8 %v677
        %v726 = vunpack.c.2.s8 %v676
        %v727 = vunpack.c.2.s8 %v677
        %v728 = vunpack.c.3.s8 %v676
        %v729 = vunpack.c.3.s8 %v677
        %v730 = vunpack.c.0.s8 %v678
        %v731 = vunpack.c.0.s8 %v679
        %v732 = vunpack.c.1.s8 %v678
        %v733 = vunpack.c.1.s8 %v679
        %v734 = vunpack.c.2.s8 %v678
        %v735 = vunpack.c.2.s8 %v679
        %v736 = vunpack.c.3.s8 %v678
        %v737 = vunpack.c.3.s8 %v679
        %v738 = vunpack.c.0.s8 %v680
        %v739 = vunpack.c.0.s8 %v681
        %v740 = vunpack.c.1.s8 %v680
        %v741 = vunpack.c.1.s8 %v681
        %v742 = vunpack.c.2.s8 %v680
        %v743 = vunpack.c.2.s8 %v681
        %v744 = vunpack.c.3.s8 %v680
        %v745 = vunpack.c.3.s8 %v681
        %v746 = vcvt.s32.f32 %v682
        %v747 = vcvt.s32.f32 %v683
        %v748 = vcvt.s32.f32 %v684
        %v749 = vcvt.s32.f32 %v685
        %v750 = vcvt.s32.f32 %v686
        %v751 = vcvt.s32.f32 %v687
        %v752 = vcvt.s32.f32 %v688
        %v753 = vcvt.s32.f32 %v689
        %v754 = vcvt.s32.f32 %v690
        %v755 = vcvt.s32.f32 %v691
        %v756 = vcvt.s32.f32 %v692
        %v757 = vcvt.s32.f32 %v693
        %v758 = vcvt.s32.f32 %v694
        %v759 = vcvt.s32.f32 %v695
        %v760 = vcvt.s32.f32 %v696
        %v761 = vcvt.s32.f32 %v697
        %v762 = vcvt.s32.f32 %v698
        %v763 = vcvt.s32.f32 %v699
        %v764 = vcvt.s32.f32 %v700
        %v765 = vcvt.s32.f32 %v701
        %v766 = vcvt.s32.f32 %v702
        %v767 = vcvt.s32.f32 %v703
        %v768 = vcvt.s32.f32 %v704
        %v769 = vcvt.s32.f32 %v705
        %v770 = vcvt.s32.f32 %v706
        %v771 = vcvt.s32.f32 %v707
        %v772 = vcvt.s32.f32 %v708
        %v773 = vcvt.s32.f32 %v709
        %v774 = vcvt.s32.f32 %v710
        %v775 = vcvt.s32.f32 %v711
        %v776 = vcvt.s32.f32 %v712
        %v777 = vcvt.s32.f32 %v713
        %v778 = vcvt.s32.f32 %v714
        %v779 = vcvt.s32.f32 %v715
        %v780 = vcvt.s32.f32 %v716
        %v781 = vcvt.s32.f32 %v717
        %v782 = vcvt.s32.f32 %v718
        %v783 = vcvt.s32.f32 %v719
        %v784 = vcvt.s32.f32 %v720
        %v785 = vcvt.s32.f32 %v721
        %v786 = vcvt.s32.f32 %v722
        %v787 = vcvt.s32.f32 %v723
        %v788 = vcvt.s32.f32 %v724
        %v789 = vcvt.s32.f32 %v725
        %v790 = vcvt.s32.f32 %v726
        %v791 = vcvt.s32.f32 %v727
        %v792 = vcvt.s32.f32 %v728
        %v793 = vcvt.s32.f32 %v729
        %v794 = vcvt.s32.f32 %v730
        %v795 = vcvt.s32.f32 %v731
        %v796 = vcvt.s32.f32 %v732
        %v797 = vcvt.s32.f32 %v733
        %v798 = vcvt.s32.f32 %v734
        %v799 = vcvt.s32.f32 %v735
        %v800 = vcvt.s32.f32 %v736
        %v801 = vcvt.s32.f32 %v737
        %v802 = vcvt.s32.f32 %v738
        %v803 = vcvt.s32.f32 %v739
        %v804 = vcvt.s32.f32 %v740
        %v805 = vcvt.s32.f32 %v741
        %v806 = vcvt.s32.f32 %v742
        %v807 = vcvt.s32.f32 %v743
        %v808 = vcvt.s32.f32 %v744
        %v809 = vcvt.s32.f32 %v745
        %v810 = vpack.c.bf16 %v748, %v746
        %v811 = vpack.c.bf16 %v749, %v747
        %v812 = vpack.c.bf16 %v752, %v750
        %v813 = vpack.c.bf16 %v753, %v751
        %v814 = vpack.c.bf16 %v756, %v754
        %v815 = vpack.c.bf16 %v757, %v755
        %v816 = vpack.c.bf16 %v760, %v758
        %v817 = vpack.c.bf16 %v761, %v759
        %v818 = vpack.c.bf16 %v764, %v762
        %v819 = vpack.c.bf16 %v765, %v763
        %v820 = vpack.c.bf16 %v768, %v766
        %v821 = vpack.c.bf16 %v769, %v767
        %v822 = vpack.c.bf16 %v772, %v770
        %v823 = vpack.c.bf16 %v773, %v771
        %v824 = vpack.c.bf16 %v776, %v774
        %v825 = vpack.c.bf16 %v777, %v775
        %v826 = vpack.c.bf16 %v780, %v778
        %v827 = vpack.c.bf16 %v781, %v779
        %v828 = vpack.c.bf16 %v784, %v782
        %v829 = vpack.c.bf16 %v785, %v783
        %v830 = vpack.c.bf16 %v788, %v786
        %v831 = vpack.c.bf16 %v789, %v787
        %v832 = vpack.c.bf16 %v792, %v790
        %v833 = vpack.c.bf16 %v793, %v791
        %v834 = vpack.c.bf16 %v796, %v794
        %v835 = vpack.c.bf16 %v797, %v795
        %v836 = vpack.c.bf16 %v800, %v798
        %v837 = vpack.c.bf16 %v801, %v799
        %v838 = vpack.c.bf16 %v804, %v802
        %v839 = vpack.c.bf16 %v805, %v803
        %v840 = vpack.c.bf16 %v808, %v806
        %v841 = vpack.c.bf16 %v809, %v807
        %v842 = vld [vmem:[%s504] sm:$0xf]
        %v843 = vld [vmem:[%s504 + $0x4] sm:$0xf]
        %v844 = vld [vmem:[%s504 + $0x8] sm:$0xf]
        %v845 = vld [vmem:[%s504 + $0xc] sm:$0xf]
        %v846 = vld [vmem:[%s504 + $0x10] sm:$0xf]
        %v847 = vld [vmem:[%s504 + $0x14] sm:$0xf]
        %v848 = vld [vmem:[%s504 + $0x18] sm:$0xf]
        %v849 = vld [vmem:[%s504 + $0x1c] sm:$0xf]
        %v850 = vld [vmem:[%s504 + $0x20] sm:$0xf]
        %v851 = vld [vmem:[%s504 + $0x24] sm:$0xf]
        %v852 = vld [vmem:[%s504 + $0x28] sm:$0xf]
        %v853 = vld [vmem:[%s504 + $0x2c] sm:$0xf]
        %v854 = vld [vmem:[%s504 + $0x30] sm:$0xf]
        %v855 = vld [vmem:[%s504 + $0x34] sm:$0xf]
        %v856 = vld [vmem:[%s504 + $0x38] sm:$0xf]
        %v857 = vld [vmem:[%s504 + $0x3c] sm:$0xf]
        %v858 = vld [vmem:[%s504 + $0x40] sm:$0xf]
        %v859 = vld [vmem:[%s504 + $0x44] sm:$0xf]
        %v860 = vld [vmem:[%s504 + $0x48] sm:$0xf]
        %v861 = vld [vmem:[%s504 + $0x4c] sm:$0xf]
        %v862 = vld [vmem:[%s504 + $0x50] sm:$0xf]
        %v863 = vld [vmem:[%s504 + $0x54] sm:$0xf]
        %v864 = vld [vmem:[%s504 + $0x58] sm:$0xf]
        %v865 = vld [vmem:[%s504 + $0x5c] sm:$0xf]
        %v866 = vld [vmem:[%s504 + $0x60] sm:$0xf]
        %v867 = vld [vmem:[%s504 + $0x64] sm:$0xf]
        %v868 = vld [vmem:[%s504 + $0x68] sm:$0xf]
        %v869 = vld [vmem:[%s504 + $0x6c] sm:$0xf]
        %v870 = vld [vmem:[%s504 + $0x70] sm:$0xf]
        %v871 = vld [vmem:[%s504 + $0x74] sm:$0xf]
        %v872 = vld [vmem:[%s504 + $0x78] sm:$0xf]
        %v873 = vld [vmem:[%s504 + $0x7c] sm:$0xf]
        %v906 = vunpack.c.l.b16 %v842
        %v907 = vunpack.c.l.b16 %v843
        %v908 = vunpack.c.l.b16 %v844
        %v909 = vunpack.c.l.b16 %v845
        %v910 = vunpack.c.l.b16 %v846
        %v911 = vunpack.c.l.b16 %v847
        %v912 = vunpack.c.l.b16 %v848
        %v913 = vunpack.c.l.b16 %v849
        %v914 = vunpack.c.l.b16 %v850
        %v915 = vunpack.c.l.b16 %v851
        %v916 = vunpack.c.l.b16 %v852
        %v917 = vunpack.c.l.b16 %v853
        %v918 = vunpack.c.l.b16 %v854
        %v919 = vunpack.c.l.b16 %v855
        %v920 = vunpack.c.l.b16 %v856
        %v921 = vunpack.c.l.b16 %v857
        %v922 = vunpack.c.l.b16 %v858
        %v923 = vunpack.c.l.b16 %v859
        %v924 = vunpack.c.l.b16 %v860
        %v925 = vunpack.c.l.b16 %v861
        %v926 = vunpack.c.l.b16 %v862
        %v927 = vunpack.c.l.b16 %v863
        %v928 = vunpack.c.l.b16 %v864
        %v929 = vunpack.c.l.b16 %v865
        %v930 = vunpack.c.l.b16 %v866
        %v931 = vunpack.c.l.b16 %v867
        %v932 = vunpack.c.l.b16 %v868
        %v933 = vunpack.c.l.b16 %v869
        %v934 = vunpack.c.l.b16 %v870
        %v935 = vunpack.c.l.b16 %v871
        %v936 = vunpack.c.l.b16 %v872
        %v937 = vunpack.c.l.b16 %v873
        %v938 = vpack.c.b16 %v907, %v906
        %v939 = vpack.c.b16 %v909, %v908
        %v940 = vpack.c.b16 %v911, %v910
        %v941 = vpack.c.b16 %v913, %v912
        %v942 = vpack.c.b16 %v915, %v914
        %v943 = vpack.c.b16 %v917, %v916
        %v944 = vpack.c.b16 %v919, %v918
        %v945 = vpack.c.b16 %v921, %v920
        %v946 = vpack.c.b16 %v923, %v922
        %v947 = vpack.c.b16 %v925, %v924
        %v948 = vpack.c.b16 %v927, %v926
        %v949 = vpack.c.b16 %v929, %v928
        %v950 = vpack.c.b16 %v931, %v930
        %v951 = vpack.c.b16 %v933, %v932
        %v952 = vpack.c.b16 %v935, %v934
        %v953 = vpack.c.b16 %v937, %v936
        %970 = vmatpush.bf16.msra.mxu0 %v945
        %971 = vmatpush.bf16.msra.mxu0 %v944
        %972 = vmatpush.bf16.msra.mxu0 %v943
        %973 = vmatpush.bf16.msra.mxu0 %v942
        %974 = vmatpush.bf16.msra.mxu0 %v941
        %975 = vmatpush.bf16.msra.mxu0 %v940
        %976 = vmatpush.bf16.msra.mxu0 %v939
        %977 = vmatpush.bf16.msra.mxu0 %v938
        %978 = vmatmul.bf16.gmra.mxu0 %v810
        %v979 = vpop.f32.mrf.mxu0
        %v980 = vadd.f32 0.0, %v979
        %v981 = vpop.f32.mrf.mxu0
        %v982 = vadd.f32 0.0, %v981
        %983 = vmatmul.bf16.gmra.mxu0 %v812
        %v984 = vpop.f32.mrf.mxu0
        %v985 = vadd.f32 0.0, %v984
        %v986 = vpop.f32.mrf.mxu0
        %v987 = vadd.f32 0.0, %v986
        %988 = vmatmul.bf16.gmra.mxu0 %v814
        %v989 = vpop.f32.mrf.mxu0
        %v990 = vadd.f32 0.0, %v989
        %v991 = vpop.f32.mrf.mxu0
        %v992 = vadd.f32 0.0, %v991
        %993 = vmatmul.bf16.gmra.mxu0 %v816
        %v994 = vpop.f32.mrf.mxu0
        %v995 = vadd.f32 0.0, %v994
        %v996 = vpop.f32.mrf.mxu0
        %v997 = vadd.f32 0.0, %v996
        %998 = vmatmul.bf16.gmra.mxu0 %v818
        %v999 = vpop.f32.mrf.mxu0
        %v1000 = vadd.f32 0.0, %v999
        %v1001 = vpop.f32.mrf.mxu0
        %v1002 = vadd.f32 0.0, %v1001
        %1003 = vmatmul.bf16.gmra.mxu0 %v820
        %v1004 = vpop.f32.mrf.mxu0
        %v1005 = vadd.f32 0.0, %v1004
        %v1006 = vpop.f32.mrf.mxu0
        %v1007 = vadd.f32 0.0, %v1006
        %1008 = vmatmul.bf16.gmra.mxu0 %v822
        %v1009 = vpop.f32.mrf.mxu0
        %v1010 = vadd.f32 0.0, %v1009
        %v1011 = vpop.f32.mrf.mxu0
        %v1012 = vadd.f32 0.0, %v1011
        %1013 = vmatmul.bf16.gmra.mxu0 %v824
        %v1014 = vpop.f32.mrf.mxu0
        %v1015 = vadd.f32 0.0, %v1014
        %v1016 = vpop.f32.mrf.mxu0
        %v1017 = vadd.f32 0.0, %v1016
        %1018 = vmatmul.bf16.gmra.mxu0 %v826
        %v1019 = vpop.f32.mrf.mxu0
        %v1020 = vadd.f32 0.0, %v1019
        %v1021 = vpop.f32.mrf.mxu0
        %v1022 = vadd.f32 0.0, %v1021
        %1023 = vmatmul.bf16.gmra.mxu0 %v828
        %v1024 = vpop.f32.mrf.mxu0
        %v1025 = vadd.f32 0.0, %v1024
        %v1026 = vpop.f32.mrf.mxu0
        %v1027 = vadd.f32 0.0, %v1026
        %1028 = vmatmul.bf16.gmra.mxu0 %v830
        %v1029 = vpop.f32.mrf.mxu0
        %v1030 = vadd.f32 0.0, %v1029
        %v1031 = vpop.f32.mrf.mxu0
        %v1032 = vadd.f32 0.0, %v1031
        %1033 = vmatmul.bf16.gmra.mxu0 %v832
        %v1034 = vpop.f32.mrf.mxu0
        %v1035 = vadd.f32 0.0, %v1034
        %v1036 = vpop.f32.mrf.mxu0
        %v1037 = vadd.f32 0.0, %v1036
        %1038 = vmatmul.bf16.gmra.mxu0 %v834
        %v1039 = vpop.f32.mrf.mxu0
        %v1040 = vadd.f32 0.0, %v1039
        %v1041 = vpop.f32.mrf.mxu0
        %v1042 = vadd.f32 0.0, %v1041
        %1043 = vmatmul.bf16.gmra.mxu0 %v836
        %v1044 = vpop.f32.mrf.mxu0
        %v1045 = vadd.f32 0.0, %v1044
        %v1046 = vpop.f32.mrf.mxu0
        %v1047 = vadd.f32 0.0, %v1046
        %1048 = vmatmul.bf16.gmra.mxu0 %v838
        %v1049 = vpop.f32.mrf.mxu0
        %v1050 = vadd.f32 0.0, %v1049
        %v1051 = vpop.f32.mrf.mxu0
        %v1052 = vadd.f32 0.0, %v1051
        %1053 = vmatmul.bf16.gmra.mxu0 %v840
        %v1054 = vpop.f32.mrf.mxu0
        %v1055 = vadd.f32 0.0, %v1054
        %v1056 = vpop.f32.mrf.mxu0
        %v1057 = vadd.f32 0.0, %v1056
        %1058 = vdwg.mxu0
        %1059 = vmatpush.bf16.msra.mxu0 %v953
        %1060 = vmatpush.bf16.msra.mxu0 %v952
        %1061 = vmatpush.bf16.msra.mxu0 %v951
        %1062 = vmatpush.bf16.msra.mxu0 %v950
        %1063 = vmatpush.bf16.msra.mxu0 %v949
        %1064 = vmatpush.bf16.msra.mxu0 %v948
        %1065 = vmatpush.bf16.msra.mxu0 %v947
        %1066 = vmatpush.bf16.msra.mxu0 %v946
        %1067 = vmatmul.bf16.gmra.mxu0 %v811
        %v1068 = vpop.f32.mrf.mxu0
        %v1069 = vadd.f32 %v980, %v1068
        %v1070 = vpop.f32.mrf.mxu0
        %v1071 = vadd.f32 %v982, %v1070
        %1072 = vmatmul.bf16.gmra.mxu0 %v813
        %v1073 = vpop.f32.mrf.mxu0
        %v1074 = vadd.f32 %v985, %v1073
        %v1075 = vpop.f32.mrf.mxu0
        %v1076 = vadd.f32 %v987, %v1075
        %1077 = vmatmul.bf16.gmra.mxu0 %v815
        %v1078 = vpop.f32.mrf.mxu0
        %v1079 = vadd.f32 %v990, %v1078
        %v1080 = vpop.f32.mrf.mxu0
        %v1081 = vadd.f32 %v992, %v1080
        %1082 = vmatmul.bf16.gmra.mxu0 %v817
        %v1083 = vpop.f32.mrf.mxu0
        %v1084 = vadd.f32 %v995, %v1083
        %v1085 = vpop.f32.mrf.mxu0
        %v1086 = vadd.f32 %v997, %v1085
        %1087 = vmatmul.bf16.gmra.mxu0 %v819
        %v1088 = vpop.f32.mrf.mxu0
        %v1089 = vadd.f32 %v1000, %v1088
        %v1090 = vpop.f32.mrf.mxu0
        %v1091 = vadd.f32 %v1002, %v1090
        %1092 = vmatmul.bf16.gmra.mxu0 %v821
        %v1093 = vpop.f32.mrf.mxu0
        %v1094 = vadd.f32 %v1005, %v1093
        %v1095 = vpop.f32.mrf.mxu0
        %v1096 = vadd.f32 %v1007, %v1095
        %1097 = vmatmul.bf16.gmra.mxu0 %v823
        %v1098 = vpop.f32.mrf.mxu0
        %v1099 = vadd.f32 %v1010, %v1098
        %v1100 = vpop.f32.mrf.mxu0
        %v1101 = vadd.f32 %v1012, %v1100
        %1102 = vmatmul.bf16.gmra.mxu0 %v825
        %v1103 = vpop.f32.mrf.mxu0
        %v1104 = vadd.f32 %v1015, %v1103
        %v1105 = vpop.f32.mrf.mxu0
        %v1106 = vadd.f32 %v1017, %v1105
        %1107 = vmatmul.bf16.gmra.mxu0 %v827
        %v1108 = vpop.f32.mrf.mxu0
        %v1109 = vadd.f32 %v1020, %v1108
        %v1110 = vpop.f32.mrf.mxu0
        %v1111 = vadd.f32 %v1022, %v1110
        %1112 = vmatmul.bf16.gmra.mxu0 %v829
        %v1113 = vpop.f32.mrf.mxu0
        %v1114 = vadd.f32 %v1025, %v1113
        %v1115 = vpop.f32.mrf.mxu0
        %v1116 = vadd.f32 %v1027, %v1115
        %1117 = vmatmul.bf16.gmra.mxu0 %v831
        %v1118 = vpop.f32.mrf.mxu0
        %v1119 = vadd.f32 %v1030, %v1118
        %v1120 = vpop.f32.mrf.mxu0
        %v1121 = vadd.f32 %v1032, %v1120
        %1122 = vmatmul.bf16.gmra.mxu0 %v833
        %v1123 = vpop.f32.mrf.mxu0
        %v1124 = vadd.f32 %v1035, %v1123
        %v1125 = vpop.f32.mrf.mxu0
        %v1126 = vadd.f32 %v1037, %v1125
        %1127 = vmatmul.bf16.gmra.mxu0 %v835
        %v1128 = vpop.f32.mrf.mxu0
        %v1129 = vadd.f32 %v1040, %v1128
        %v1130 = vpop.f32.mrf.mxu0
        %v1131 = vadd.f32 %v1042, %v1130
        %1132 = vmatmul.bf16.gmra.mxu0 %v837
        %v1133 = vpop.f32.mrf.mxu0
        %v1134 = vadd.f32 %v1045, %v1133
        %v1135 = vpop.f32.mrf.mxu0
        %v1136 = vadd.f32 %v1047, %v1135
        %1137 = vmatmul.bf16.gmra.mxu0 %v839
        %v1138 = vpop.f32.mrf.mxu0
        %v1139 = vadd.f32 %v1050, %v1138
        %v1140 = vpop.f32.mrf.mxu0
        %v1141 = vadd.f32 %v1052, %v1140
        %1142 = vmatmul.bf16.gmra.mxu0 %v841
        %v1143 = vpop.f32.mrf.mxu0
        %v1144 = vadd.f32 %v1055, %v1143
        %v1145 = vpop.f32.mrf.mxu0
        %v1146 = vadd.f32 %v1057, %v1145
        %1147 = vdwg.mxu0
        %v1148 = vadd.f32 %v634, %v1069
        %v1149 = vadd.f32 %v635, %v1071
        %v1150 = vadd.f32 %v636, %v1074
        %v1151 = vadd.f32 %v637, %v1076
        %v1152 = vadd.f32 %v638, %v1079
        %v1153 = vadd.f32 %v639, %v1081
        %v1154 = vadd.f32 %v640, %v1084
        %v1155 = vadd.f32 %v641, %v1086
        %v1156 = vadd.f32 %v642, %v1089
        %v1157 = vadd.f32 %v643, %v1091
        %v1158 = vadd.f32 %v644, %v1094
        %v1159 = vadd.f32 %v645, %v1096
        %v1160 = vadd.f32 %v646, %v1099
        %v1161 = vadd.f32 %v647, %v1101
        %v1162 = vadd.f32 %v648, %v1104
        %v1163 = vadd.f32 %v649, %v1106
        %v1164 = vadd.f32 %v650, %v1109
        %v1165 = vadd.f32 %v651, %v1111
        %v1166 = vadd.f32 %v652, %v1114
        %v1167 = vadd.f32 %v653, %v1116
        %v1168 = vadd.f32 %v654, %v1119
        %v1169 = vadd.f32 %v655, %v1121
        %v1170 = vadd.f32 %v656, %v1124
        %v1171 = vadd.f32 %v657, %v1126
        %v1172 = vadd.f32 %v658, %v1129
        %v1173 = vadd.f32 %v659, %v1131
        %v1174 = vadd.f32 %v660, %v1134
        %v1175 = vadd.f32 %v661, %v1136
        %v1176 = vadd.f32 %v662, %v1139
        %v1177 = vadd.f32 %v663, %v1141
        %v1178 = vadd.f32 %v664, %v1144
        %v1179 = vadd.f32 %v665, %v1146
        %1180 = vst [vmem:[#allocation2] sm:$0xff] %v1148
        %1181 = vst [vmem:[#allocation2 + $0x8] sm:$0xff] %v1149
        %1182 = vst [vmem:[#allocation2 + $0x10] sm:$0xff] %v1150
        %1183 = vst [vmem:[#allocation2 + $0x18] sm:$0xff] %v1151
        %1184 = vst [vmem:[#allocation2 + $0x20] sm:$0xff] %v1152
        %1185 = vst [vmem:[#allocation2 + $0x28] sm:$0xff] %v1153
        %1186 = vst [vmem:[#allocation2 + $0x30] sm:$0xff] %v1154
        %1187 = vst [vmem:[#allocation2 + $0x38] sm:$0xff] %v1155
        %1188 = vst [vmem:[#allocation2 + $0x40] sm:$0xff] %v1156
        %1189 = vst [vmem:[#allocation2 + $0x48] sm:$0xff] %v1157
        %1190 = vst [vmem:[#allocation2 + $0x50] sm:$0xff] %v1158
        %1191 = vst [vmem:[#allocation2 + $0x58] sm:$0xff] %v1159
        %1192 = vst [vmem:[#allocation2 + $0x60] sm:$0xff] %v1160
        %1193 = vst [vmem:[#allocation2 + $0x68] sm:$0xff] %v1161
        %1194 = vst [vmem:[#allocation2 + $0x70] sm:$0xff] %v1162
        %1195 = vst [vmem:[#allocation2 + $0x78] sm:$0xff] %v1163
        %1196 = vst [vmem:[#allocation2 + $0x80] sm:$0xff] %v1164
        %1197 = vst [vmem:[#allocation2 + $0x88] sm:$0xff] %v1165
        %1198 = vst [vmem:[#allocation2 + $0x90] sm:$0xff] %v1166
        %1199 = vst [vmem:[#allocation2 + $0x98] sm:$0xff] %v1167
        %1200 = vst [vmem:[#allocation2 + $0xa0] sm:$0xff] %v1168
        %1201 = vst [vmem:[#allocation2 + $0xa8] sm:$0xff] %v1169
        %1202 = vst [vmem:[#allocation2 + $0xb0] sm:$0xff] %v1170
        %1203 = vst [vmem:[#allocation2 + $0xb8] sm:$0xff] %v1171
        %1204 = vst [vmem:[#allocation2 + $0xc0] sm:$0xff] %v1172
        %1205 = vst [vmem:[#allocation2 + $0xc8] sm:$0xff] %v1173
        %1206 = vst [vmem:[#allocation2 + $0xd0] sm:$0xff] %v1174
        %1207 = vst [vmem:[#allocation2 + $0xd8] sm:$0xff] %v1175
        %1208 = vst [vmem:[#allocation2 + $0xe0] sm:$0xff] %v1176
        %1209 = vst [vmem:[#allocation2 + $0xe8] sm:$0xff] %v1177
        %1210 = vst [vmem:[#allocation2 + $0xf0] sm:$0xff] %v1178
        %1211 = vst [vmem:[#allocation2 + $0xf8] sm:$0xff] %v1179
        %p1212 = scmp.eq.s32.totalorder %s41, 1
        // Predicated region
        $region104: #{tpu_custom_call.1} parent=74 // pred_check
          %p1213 = pneg %p1212
        $region105: #{tpu_custom_call.1} parent=74 // pred_check_branch
          %1215 = sbr.rel (%p1213) target = $region107
        $region106: #{tpu_custom_call.1} parent=74 // pred_region
          %v1216 = vld [vmem:[#allocation2] sm:$0xff]
          %v1217 = vld [vmem:[#allocation2 + $0x8] sm:$0xff]
          %v1218 = vld [vmem:[#allocation2 + $0x10] sm:$0xff]
          %v1219 = vld [vmem:[#allocation2 + $0x18] sm:$0xff]
          %v1220 = vld [vmem:[#allocation2 + $0x20] sm:$0xff]
          %v1221 = vld [vmem:[#allocation2 + $0x28] sm:$0xff]
          %v1222 = vld [vmem:[#allocation2 + $0x30] sm:$0xff]
          %v1223 = vld [vmem:[#allocation2 + $0x38] sm:$0xff]
          %v1224 = vld [vmem:[#allocation2 + $0x40] sm:$0xff]
          %v1225 = vld [vmem:[#allocation2 + $0x48] sm:$0xff]
          %v1226 = vld [vmem:[#allocation2 + $0x50] sm:$0xff]
          %v1227 = vld [vmem:[#allocation2 + $0x58] sm:$0xff]
          %v1228 = vld [vmem:[#allocation2 + $0x60] sm:$0xff]
          %v1229 = vld [vmem:[#allocation2 + $0x68] sm:$0xff]
          %v1230 = vld [vmem:[#allocation2 + $0x70] sm:$0xff]
          %v1231 = vld [vmem:[#allocation2 + $0x78] sm:$0xff]
          %v1232 = vld [vmem:[#allocation2 + $0x80] sm:$0xff]
          %v1233 = vld [vmem:[#allocation2 + $0x88] sm:$0xff]
          %v1234 = vld [vmem:[#allocation2 + $0x90] sm:$0xff]
          %v1235 = vld [vmem:[#allocation2 + $0x98] sm:$0xff]
          %v1236 = vld [vmem:[#allocation2 + $0xa0] sm:$0xff]
          %v1237 = vld [vmem:[#allocation2 + $0xa8] sm:$0xff]
          %v1238 = vld [vmem:[#allocation2 + $0xb0] sm:$0xff]
          %v1239 = vld [vmem:[#allocation2 + $0xb8] sm:$0xff]
          %v1240 = vld [vmem:[#allocation2 + $0xc0] sm:$0xff]
          %v1241 = vld [vmem:[#allocation2 + $0xc8] sm:$0xff]
          %v1242 = vld [vmem:[#allocation2 + $0xd0] sm:$0xff]
          %v1243 = vld [vmem:[#allocation2 + $0xd8] sm:$0xff]
          %v1244 = vld [vmem:[#allocation2 + $0xe0] sm:$0xff]
          %v1245 = vld [vmem:[#allocation2 + $0xe8] sm:$0xff]
          %v1246 = vld [vmem:[#allocation2 + $0xf0] sm:$0xff]
          %v1247 = vld [vmem:[#allocation2 + $0xf8] sm:$0xff]
          %v1248 = vld [vmem:[%s594] sm:$0xff]
          %v1249 = vld [vmem:[%s594 + $0x8] sm:$0xff]
          %v1250 = vld [vmem:[%s594 + $0x10] sm:$0xff]
          %v1251 = vld [vmem:[%s594 + $0x18] sm:$0xff]
          %v1252 = vld [vmem:[%s594 + $0x20] sm:$0xff]
          %v1253 = vld [vmem:[%s594 + $0x28] sm:$0xff]
          %v1254 = vld [vmem:[%s594 + $0x30] sm:$0xff]
          %v1255 = vld [vmem:[%s594 + $0x38] sm:$0xff]
          %v1256 = vld [vmem:[%s594 + $0x40] sm:$0xff]
          %v1257 = vld [vmem:[%s594 + $0x48] sm:$0xff]
          %v1258 = vld [vmem:[%s594 + $0x50] sm:$0xff]
          %v1259 = vld [vmem:[%s594 + $0x58] sm:$0xff]
          %v1260 = vld [vmem:[%s594 + $0x60] sm:$0xff]
          %v1261 = vld [vmem:[%s594 + $0x68] sm:$0xff]
          %v1262 = vld [vmem:[%s594 + $0x70] sm:$0xff]
          %v1263 = vld [vmem:[%s594 + $0x78] sm:$0xff]
          %v1264 = vld [vmem:[%s594 + $0x80] sm:$0xff]
          %v1265 = vld [vmem:[%s594 + $0x88] sm:$0xff]
          %v1266 = vld [vmem:[%s594 + $0x90] sm:$0xff]
          %v1267 = vld [vmem:[%s594 + $0x98] sm:$0xff]
          %v1268 = vld [vmem:[%s594 + $0xa0] sm:$0xff]
          %v1269 = vld [vmem:[%s594 + $0xa8] sm:$0xff]
          %v1270 = vld [vmem:[%s594 + $0xb0] sm:$0xff]
          %v1271 = vld [vmem:[%s594 + $0xb8] sm:$0xff]
          %v1272 = vld [vmem:[%s594 + $0xc0] sm:$0xff]
          %v1273 = vld [vmem:[%s594 + $0xc8] sm:$0xff]
          %v1274 = vld [vmem:[%s594 + $0xd0] sm:$0xff]
          %v1275 = vld [vmem:[%s594 + $0xd8] sm:$0xff]
          %v1276 = vld [vmem:[%s594 + $0xe0] sm:$0xff]
          %v1277 = vld [vmem:[%s594 + $0xe8] sm:$0xff]
          %v1278 = vld [vmem:[%s594 + $0xf0] sm:$0xff]
          %v1279 = vld [vmem:[%s594 + $0xf8] sm:$0xff]
          %1281 = vset.pattern.permute.xlu0 0
          %1282 = vperm.xlu0 %1281, %v1248
          %v1283 = vpop.permute.xlu0 %1282
          %1286 = vset.pattern.permute.xlu0 0
          %1287 = vperm.xlu0 %1286, %v1249
          %v1288 = vpop.permute.xlu0 %1287
          %1291 = vset.pattern.permute.xlu0 0
          %1292 = vperm.xlu0 %1291, %v1250
          %v1293 = vpop.permute.xlu0 %1292
          %1296 = vset.pattern.permute.xlu0 0
          %1297 = vperm.xlu0 %1296, %v1251
          %v1298 = vpop.permute.xlu0 %1297
          %1301 = vset.pattern.permute.xlu0 0
          %1302 = vperm.xlu0 %1301, %v1252
          %v1303 = vpop.permute.xlu0 %1302
          %1306 = vset.pattern.permute.xlu0 0
          %1307 = vperm.xlu0 %1306, %v1253
          %v1308 = vpop.permute.xlu0 %1307
          %1311 = vset.pattern.permute.xlu0 0
          %1312 = vperm.xlu0 %1311, %v1254
          %v1313 = vpop.permute.xlu0 %1312
          %1316 = vset.pattern.permute.xlu0 0
          %1317 = vperm.xlu0 %1316, %v1255
          %v1318 = vpop.permute.xlu0 %1317
          %1321 = vset.pattern.permute.xlu0 0
          %1322 = vperm.xlu0 %1321, %v1256
          %v1323 = vpop.permute.xlu0 %1322
          %1326 = vset.pattern.permute.xlu0 0
          %1327 = vperm.xlu0 %1326, %v1257
          %v1328 = vpop.permute.xlu0 %1327
          %1331 = vset.pattern.permute.xlu0 0
          %1332 = vperm.xlu0 %1331, %v1258
          %v1333 = vpop.permute.xlu0 %1332
          %1336 = vset.pattern.permute.xlu0 0
          %1337 = vperm.xlu0 %1336, %v1259
          %v1338 = vpop.permute.xlu0 %1337
          %1341 = vset.pattern.permute.xlu0 0
          %1342 = vperm.xlu0 %1341, %v1260
          %v1343 = vpop.permute.xlu0 %1342
          %1346 = vset.pattern.permute.xlu0 0
          %1347 = vperm.xlu0 %1346, %v1261
          %v1348 = vpop.permute.xlu0 %1347
          %1351 = vset.pattern.permute.xlu0 0
          %1352 = vperm.xlu0 %1351, %v1262
          %v1353 = vpop.permute.xlu0 %1352
          %1356 = vset.pattern.permute.xlu0 0
          %1357 = vperm.xlu0 %1356, %v1263
          %v1358 = vpop.permute.xlu0 %1357
          %1361 = vset.pattern.permute.xlu0 0
          %1362 = vperm.xlu0 %1361, %v1264
          %v1363 = vpop.permute.xlu0 %1362
          %1366 = vset.pattern.permute.xlu0 0
          %1367 = vperm.xlu0 %1366, %v1265
          %v1368 = vpop.permute.xlu0 %1367
          %1371 = vset.pattern.permute.xlu0 0
          %1372 = vperm.xlu0 %1371, %v1266
          %v1373 = vpop.permute.xlu0 %1372
          %1376 = vset.pattern.permute.xlu0 0
          %1377 = vperm.xlu0 %1376, %v1267
          %v1378 = vpop.permute.xlu0 %1377
          %1381 = vset.pattern.permute.xlu0 0
          %1382 = vperm.xlu0 %1381, %v1268
          %v1383 = vpop.permute.xlu0 %1382
          %1386 = vset.pattern.permute.xlu0 0
          %1387 = vperm.xlu0 %1386, %v1269
          %v1388 = vpop.permute.xlu0 %1387
          %1391 = vset.pattern.permute.xlu0 0
          %1392 = vperm.xlu0 %1391, %v1270
          %v1393 = vpop.permute.xlu0 %1392
          %1396 = vset.pattern.permute.xlu0 0
          %1397 = vperm.xlu0 %1396, %v1271
          %v1398 = vpop.permute.xlu0 %1397
          %1401 = vset.pattern.permute.xlu0 0
          %1402 = vperm.xlu0 %1401, %v1272
          %v1403 = vpop.permute.xlu0 %1402
          %1406 = vset.pattern.permute.xlu0 0
          %1407 = vperm.xlu0 %1406, %v1273
          %v1408 = vpop.permute.xlu0 %1407
          %1411 = vset.pattern.permute.xlu0 0
          %1412 = vperm.xlu0 %1411, %v1274
          %v1413 = vpop.permute.xlu0 %1412
          %1416 = vset.pattern.permute.xlu0 0
          %1417 = vperm.xlu0 %1416, %v1275
          %v1418 = vpop.permute.xlu0 %1417
          %1421 = vset.pattern.permute.xlu0 0
          %1422 = vperm.xlu0 %1421, %v1276
          %v1423 = vpop.permute.xlu0 %1422
          %1426 = vset.pattern.permute.xlu0 0
          %1427 = vperm.xlu0 %1426, %v1277
          %v1428 = vpop.permute.xlu0 %1427
          %1431 = vset.pattern.permute.xlu0 0
          %1432 = vperm.xlu0 %1431, %v1278
          %v1433 = vpop.permute.xlu0 %1432
          %1436 = vset.pattern.permute.xlu0 0
          %1437 = vperm.xlu0 %1436, %v1279
          %v1438 = vpop.permute.xlu0 %1437
          %v1440 = vmul.f32 %v1216, %v1283
          %v1441 = vmul.f32 %v1217, %v1288
          %v1442 = vmul.f32 %v1218, %v1293
          %v1443 = vmul.f32 %v1219, %v1298
          %v1444 = vmul.f32 %v1220, %v1303
          %v1445 = vmul.f32 %v1221, %v1308
          %v1446 = vmul.f32 %v1222, %v1313
          %v1447 = vmul.f32 %v1223, %v1318
          %v1448 = vmul.f32 %v1224, %v1323
          %v1449 = vmul.f32 %v1225, %v1328
          %v1450 = vmul.f32 %v1226, %v1333
          %v1451 = vmul.f32 %v1227, %v1338
          %v1452 = vmul.f32 %v1228, %v1343
          %v1453 = vmul.f32 %v1229, %v1348
          %v1454 = vmul.f32 %v1230, %v1353
          %v1455 = vmul.f32 %v1231, %v1358
          %v1456 = vmul.f32 %v1232, %v1363
          %v1457 = vmul.f32 %v1233, %v1368
          %v1458 = vmul.f32 %v1234, %v1373
          %v1459 = vmul.f32 %v1235, %v1378
          %v1460 = vmul.f32 %v1236, %v1383
          %v1461 = vmul.f32 %v1237, %v1388
          %v1462 = vmul.f32 %v1238, %v1393
          %v1463 = vmul.f32 %v1239, %v1398
          %v1464 = vmul.f32 %v1240, %v1403
          %v1465 = vmul.f32 %v1241, %v1408
          %v1466 = vmul.f32 %v1242, %v1413
          %v1467 = vmul.f32 %v1243, %v1418
          %v1468 = vmul.f32 %v1244, %v1423
          %v1469 = vmul.f32 %v1245, %v1428
          %v1470 = vmul.f32 %v1246, %v1433
          %v1471 = vmul.f32 %v1247, %v1438
          %v1472 = vpack.c.bf16 %v1440, %v1440
          %v1473 = vpack.c.bf16 %v1441, %v1441
          %v1474 = vpack.c.bf16 %v1442, %v1442
          %v1475 = vpack.c.bf16 %v1443, %v1443
          %v1476 = vpack.c.bf16 %v1444, %v1444
          %v1477 = vpack.c.bf16 %v1445, %v1445
          %v1478 = vpack.c.bf16 %v1446, %v1446
          %v1479 = vpack.c.bf16 %v1447, %v1447
          %v1480 = vpack.c.bf16 %v1448, %v1448
          %v1481 = vpack.c.bf16 %v1449, %v1449
          %v1482 = vpack.c.bf16 %v1450, %v1450
          %v1483 = vpack.c.bf16 %v1451, %v1451
          %v1484 = vpack.c.bf16 %v1452, %v1452
          %v1485 = vpack.c.bf16 %v1453, %v1453
          %v1486 = vpack.c.bf16 %v1454, %v1454
          %v1487 = vpack.c.bf16 %v1455, %v1455
          %v1488 = vpack.c.bf16 %v1456, %v1456
          %v1489 = vpack.c.bf16 %v1457, %v1457
          %v1490 = vpack.c.bf16 %v1458, %v1458
          %v1491 = vpack.c.bf16 %v1459, %v1459
          %v1492 = vpack.c.bf16 %v1460, %v1460
          %v1493 = vpack.c.bf16 %v1461, %v1461
          %v1494 = vpack.c.bf16 %v1462, %v1462
          %v1495 = vpack.c.bf16 %v1463, %v1463
          %v1496 = vpack.c.bf16 %v1464, %v1464
          %v1497 = vpack.c.bf16 %v1465, %v1465
          %v1498 = vpack.c.bf16 %v1466, %v1466
          %v1499 = vpack.c.bf16 %v1467, %v1467
          %v1500 = vpack.c.bf16 %v1468, %v1468
          %v1501 = vpack.c.bf16 %v1469, %v1469
          %v1502 = vpack.c.bf16 %v1470, %v1470
          %v1503 = vpack.c.bf16 %v1471, %v1471
          %v1504 = vld [vmem:[%s514] sm:$0xf]
          %v1505 = vld [vmem:[%s514 + $0x4] sm:$0xf]
          %v1506 = vld [vmem:[%s514 + $0x8] sm:$0xf]
          %v1507 = vld [vmem:[%s514 + $0xc] sm:$0xf]
          %v1508 = vld [vmem:[%s514 + $0x10] sm:$0xf]
          %v1509 = vld [vmem:[%s514 + $0x14] sm:$0xf]
          %v1510 = vld [vmem:[%s514 + $0x18] sm:$0xf]
          %v1511 = vld [vmem:[%s514 + $0x1c] sm:$0xf]
          %v1512 = vld [vmem:[%s514 + $0x20] sm:$0xf]
          %v1513 = vld [vmem:[%s514 + $0x24] sm:$0xf]
          %v1514 = vld [vmem:[%s514 + $0x28] sm:$0xf]
          %v1515 = vld [vmem:[%s514 + $0x2c] sm:$0xf]
          %v1516 = vld [vmem:[%s514 + $0x30] sm:$0xf]
          %v1517 = vld [vmem:[%s514 + $0x34] sm:$0xf]
          %v1518 = vld [vmem:[%s514 + $0x38] sm:$0xf]
          %v1519 = vld [vmem:[%s514 + $0x3c] sm:$0xf]
          %v1520 = vld [vmem:[%s514 + $0x40] sm:$0xf]
          %v1521 = vld [vmem:[%s514 + $0x44] sm:$0xf]
          %v1522 = vld [vmem:[%s514 + $0x48] sm:$0xf]
          %v1523 = vld [vmem:[%s514 + $0x4c] sm:$0xf]
          %v1524 = vld [vmem:[%s514 + $0x50] sm:$0xf]
          %v1525 = vld [vmem:[%s514 + $0x54] sm:$0xf]
          %v1526 = vld [vmem:[%s514 + $0x58] sm:$0xf]
          %v1527 = vld [vmem:[%s514 + $0x5c] sm:$0xf]
          %v1528 = vld [vmem:[%s514 + $0x60] sm:$0xf]
          %v1529 = vld [vmem:[%s514 + $0x64] sm:$0xf]
          %v1530 = vld [vmem:[%s514 + $0x68] sm:$0xf]
          %v1531 = vld [vmem:[%s514 + $0x6c] sm:$0xf]
          %v1532 = vld [vmem:[%s514 + $0x70] sm:$0xf]
          %v1533 = vld [vmem:[%s514 + $0x74] sm:$0xf]
          %v1534 = vld [vmem:[%s514 + $0x78] sm:$0xf]
          %v1535 = vld [vmem:[%s514 + $0x7c] sm:$0xf]
          %v1568 = vunpack.c.l.b16 %v1472
          %v1569 = vunpack.c.l.b16 %v1473
          %v1570 = vunpack.c.l.b16 %v1474
          %v1571 = vunpack.c.l.b16 %v1475
          %v1572 = vunpack.c.l.b16 %v1476
          %v1573 = vunpack.c.l.b16 %v1477
          %v1574 = vunpack.c.l.b16 %v1478
          %v1575 = vunpack.c.l.b16 %v1479
          %v1576 = vunpack.c.l.b16 %v1480
          %v1577 = vunpack.c.l.b16 %v1481
          %v1578 = vunpack.c.l.b16 %v1482
          %v1579 = vunpack.c.l.b16 %v1483
          %v1580 = vunpack.c.l.b16 %v1484
          %v1581 = vunpack.c.l.b16 %v1485
          %v1582 = vunpack.c.l.b16 %v1486
          %v1583 = vunpack.c.l.b16 %v1487
          %v1584 = vunpack.c.l.b16 %v1488
          %v1585 = vunpack.c.l.b16 %v1489
          %v1586 = vunpack.c.l.b16 %v1490
          %v1587 = vunpack.c.l.b16 %v1491
          %v1588 = vunpack.c.l.b16 %v1492
          %v1589 = vunpack.c.l.b16 %v1493
          %v1590 = vunpack.c.l.b16 %v1494
          %v1591 = vunpack.c.l.b16 %v1495
          %v1592 = vunpack.c.l.b16 %v1496
          %v1593 = vunpack.c.l.b16 %v1497
          %v1594 = vunpack.c.l.b16 %v1498
          %v1595 = vunpack.c.l.b16 %v1499
          %v1596 = vunpack.c.l.b16 %v1500
          %v1597 = vunpack.c.l.b16 %v1501
          %v1598 = vunpack.c.l.b16 %v1502
          %v1599 = vunpack.c.l.b16 %v1503
          %v1600 = vpack.c.b16 %v1569, %v1568
          %v1601 = vpack.c.b16 %v1571, %v1570
          %v1602 = vpack.c.b16 %v1573, %v1572
          %v1603 = vpack.c.b16 %v1575, %v1574
          %v1604 = vpack.c.b16 %v1577, %v1576
          %v1605 = vpack.c.b16 %v1579, %v1578
          %v1606 = vpack.c.b16 %v1581, %v1580
          %v1607 = vpack.c.b16 %v1583, %v1582
          %v1608 = vpack.c.b16 %v1585, %v1584
          %v1609 = vpack.c.b16 %v1587, %v1586
          %v1610 = vpack.c.b16 %v1589, %v1588
          %v1611 = vpack.c.b16 %v1591, %v1590
          %v1612 = vpack.c.b16 %v1593, %v1592
          %v1613 = vpack.c.b16 %v1595, %v1594
          %v1614 = vpack.c.b16 %v1597, %v1596
          %v1615 = vpack.c.b16 %v1599, %v1598
          %v1664 = vunpack.c.l.b16 %v1504
          %v1665 = vunpack.c.l.b16 %v1505
          %v1666 = vunpack.c.l.b16 %v1506
          %v1667 = vunpack.c.l.b16 %v1507
          %v1668 = vunpack.c.l.b16 %v1508
          %v1669 = vunpack.c.l.b16 %v1509
          %v1670 = vunpack.c.l.b16 %v1510
          %v1671 = vunpack.c.l.b16 %v1511
          %v1672 = vunpack.c.l.b16 %v1512
          %v1673 = vunpack.c.l.b16 %v1513
          %v1674 = vunpack.c.l.b16 %v1514
          %v1675 = vunpack.c.l.b16 %v1515
          %v1676 = vunpack.c.l.b16 %v1516
          %v1677 = vunpack.c.l.b16 %v1517
          %v1678 = vunpack.c.l.b16 %v1518
          %v1679 = vunpack.c.l.b16 %v1519
          %v1680 = vunpack.c.l.b16 %v1520
          %v1681 = vunpack.c.l.b16 %v1521
          %v1682 = vunpack.c.l.b16 %v1522
          %v1683 = vunpack.c.l.b16 %v1523
          %v1684 = vunpack.c.l.b16 %v1524
          %v1685 = vunpack.c.l.b16 %v1525
          %v1686 = vunpack.c.l.b16 %v1526
          %v1687 = vunpack.c.l.b16 %v1527
          %v1688 = vunpack.c.l.b16 %v1528
          %v1689 = vunpack.c.l.b16 %v1529
          %v1690 = vunpack.c.l.b16 %v1530
          %v1691 = vunpack.c.l.b16 %v1531
          %v1692 = vunpack.c.l.b16 %v1532
          %v1693 = vunpack.c.l.b16 %v1533
          %v1694 = vunpack.c.l.b16 %v1534
          %v1695 = vunpack.c.l.b16 %v1535
          %v1696 = vpack.c.b16 %v1665, %v1664
          %v1697 = vpack.c.b16 %v1667, %v1666
          %v1698 = vpack.c.b16 %v1669, %v1668
          %v1699 = vpack.c.b16 %v1671, %v1670
          %v1700 = vpack.c.b16 %v1673, %v1672
          %v1701 = vpack.c.b16 %v1675, %v1674
          %v1702 = vpack.c.b16 %v1677, %v1676
          %v1703 = vpack.c.b16 %v1679, %v1678
          %v1704 = vpack.c.b16 %v1681, %v1680
          %v1705 = vpack.c.b16 %v1683, %v1682
          %v1706 = vpack.c.b16 %v1685, %v1684
          %v1707 = vpack.c.b16 %v1687, %v1686
          %v1708 = vpack.c.b16 %v1689, %v1688
          %v1709 = vpack.c.b16 %v1691, %v1690
          %v1710 = vpack.c.b16 %v1693, %v1692
          %v1711 = vpack.c.b16 %v1695, %v1694
          %v1728 = vld [vmem:[#allocation10] sm:$0xf]
          %v1729 = vld [vmem:[#allocation10 + $0x4] sm:$0xf]
          %v1730 = vld [vmem:[#allocation10 + $0x8] sm:$0xf]
          %v1731 = vld [vmem:[#allocation10 + $0xc] sm:$0xf]
          %v1732 = vld [vmem:[#allocation10 + $0x10] sm:$0xf]
          %v1733 = vld [vmem:[#allocation10 + $0x14] sm:$0xf]
          %v1734 = vld [vmem:[#allocation10 + $0x18] sm:$0xf]
          %v1735 = vld [vmem:[#allocation10 + $0x1c] sm:$0xf]
          %v1736 = vld [vmem:[#allocation10 + $0x20] sm:$0xf]
          %v1737 = vld [vmem:[#allocation10 + $0x24] sm:$0xf]
          %v1738 = vld [vmem:[#allocation10 + $0x28] sm:$0xf]
          %v1739 = vld [vmem:[#allocation10 + $0x2c] sm:$0xf]
          %v1740 = vld [vmem:[#allocation10 + $0x30] sm:$0xf]
          %v1741 = vld [vmem:[#allocation10 + $0x34] sm:$0xf]
          %v1742 = vld [vmem:[#allocation10 + $0x38] sm:$0xf]
          %v1743 = vld [vmem:[#allocation10 + $0x3c] sm:$0xf]
          %v1744 = vld [vmem:[#allocation10 + $0x40] sm:$0xf]
          %v1745 = vld [vmem:[#allocation10 + $0x44] sm:$0xf]
          %v1746 = vld [vmem:[#allocation10 + $0x48] sm:$0xf]
          %v1747 = vld [vmem:[#allocation10 + $0x4c] sm:$0xf]
          %v1748 = vld [vmem:[#allocation10 + $0x50] sm:$0xf]
          %v1749 = vld [vmem:[#allocation10 + $0x54] sm:$0xf]
          %v1750 = vld [vmem:[#allocation10 + $0x58] sm:$0xf]
          %v1751 = vld [vmem:[#allocation10 + $0x5c] sm:$0xf]
          %v1752 = vld [vmem:[#allocation10 + $0x60] sm:$0xf]
          %v1753 = vld [vmem:[#allocation10 + $0x64] sm:$0xf]
          %v1754 = vld [vmem:[#allocation10 + $0x68] sm:$0xf]
          %v1755 = vld [vmem:[#allocation10 + $0x6c] sm:$0xf]
          %v1756 = vld [vmem:[#allocation10 + $0x70] sm:$0xf]
          %v1757 = vld [vmem:[#allocation10 + $0x74] sm:$0xf]
          %v1758 = vld [vmem:[#allocation10 + $0x78] sm:$0xf]
          %v1759 = vld [vmem:[#allocation10 + $0x7c] sm:$0xf]
          %v1760 = vld [vmem:[%s5] sm:$0x1]
          %v1762 = vperm.slane %v1760, 0
          %v1796 = vunpack.c.l.b16 %v1728
          %v1797 = vunpack.c.l.b16 %v1729
          %v1798 = vunpack.c.l.b16 %v1730
          %v1799 = vunpack.c.l.b16 %v1731
          %v1800 = vunpack.c.l.b16 %v1732
          %v1801 = vunpack.c.l.b16 %v1733
          %v1802 = vunpack.c.l.b16 %v1734
          %v1803 = vunpack.c.l.b16 %v1735
          %v1804 = vunpack.c.l.b16 %v1736
          %v1805 = vunpack.c.l.b16 %v1737
          %v1806 = vunpack.c.l.b16 %v1738
          %v1807 = vunpack.c.l.b16 %v1739
          %v1808 = vunpack.c.l.b16 %v1740
          %v1809 = vunpack.c.l.b16 %v1741
          %v1810 = vunpack.c.l.b16 %v1742
          %v1811 = vunpack.c.l.b16 %v1743
          %v1812 = vunpack.c.l.b16 %v1744
          %v1813 = vunpack.c.l.b16 %v1745
          %v1814 = vunpack.c.l.b16 %v1746
          %v1815 = vunpack.c.l.b16 %v1747
          %v1816 = vunpack.c.l.b16 %v1748
          %v1817 = vunpack.c.l.b16 %v1749
          %v1818 = vunpack.c.l.b16 %v1750
          %v1819 = vunpack.c.l.b16 %v1751
          %v1820 = vunpack.c.l.b16 %v1752
          %v1821 = vunpack.c.l.b16 %v1753
          %v1822 = vunpack.c.l.b16 %v1754
          %v1823 = vunpack.c.l.b16 %v1755
          %v1824 = vunpack.c.l.b16 %v1756
          %v1825 = vunpack.c.l.b16 %v1757
          %v1826 = vunpack.c.l.b16 %v1758
          %v1827 = vunpack.c.l.b16 %v1759
          %v1828 = vpack.c.b16 %v1797, %v1796
          %v1829 = vpack.c.b16 %v1799, %v1798
          %v1830 = vpack.c.b16 %v1801, %v1800
          %v1831 = vpack.c.b16 %v1803, %v1802
          %v1832 = vpack.c.b16 %v1805, %v1804
          %v1833 = vpack.c.b16 %v1807, %v1806
          %v1834 = vpack.c.b16 %v1809, %v1808
          %v1835 = vpack.c.b16 %v1811, %v1810
          %v1836 = vpack.c.b16 %v1813, %v1812
          %v1837 = vpack.c.b16 %v1815, %v1814
          %v1838 = vpack.c.b16 %v1817, %v1816
          %v1839 = vpack.c.b16 %v1819, %v1818
          %v1840 = vpack.c.b16 %v1821, %v1820
          %v1841 = vpack.c.b16 %v1823, %v1822
          %v1842 = vpack.c.b16 %v1825, %v1824
          %v1843 = vpack.c.b16 %v1827, %v1826
          %1860 = vmatpush.bf16.msra.mxu0 %v1835
          %1861 = vmatpush.bf16.msra.mxu0 %v1834
          %1862 = vmatpush.bf16.msra.mxu0 %v1833
          %1863 = vmatpush.bf16.msra.mxu0 %v1832
          %1864 = vmatpush.bf16.msra.mxu0 %v1831
          %1865 = vmatpush.bf16.msra.mxu0 %v1830
          %1866 = vmatpush.bf16.msra.mxu0 %v1829
          %1867 = vmatpush.bf16.msra.mxu0 %v1828
          %1868 = vmatmul.bf16.gmra.mxu0 %v1600
          %v1869 = vpop.f32.mrf.mxu0
          %v1870 = vadd.f32 %v1762, %v1869
          %v1871 = vpop.f32.mrf.mxu0
          %v1872 = vadd.f32 %v1762, %v1871
          %1873 = vmatmul.bf16.gmra.mxu0 %v1601
          %v1874 = vpop.f32.mrf.mxu0
          %v1875 = vadd.f32 %v1762, %v1874
          %v1876 = vpop.f32.mrf.mxu0
          %v1877 = vadd.f32 %v1762, %v1876
          %1878 = vmatmul.bf16.gmra.mxu0 %v1602
          %v1879 = vpop.f32.mrf.mxu0
          %v1880 = vadd.f32 %v1762, %v1879
          %v1881 = vpop.f32.mrf.mxu0
          %v1882 = vadd.f32 %v1762, %v1881
          %1883 = vmatmul.bf16.gmra.mxu0 %v1603
          %v1884 = vpop.f32.mrf.mxu0
          %v1885 = vadd.f32 %v1762, %v1884
          %v1886 = vpop.f32.mrf.mxu0
          %v1887 = vadd.f32 %v1762, %v1886
          %1888 = vmatmul.bf16.gmra.mxu0 %v1604
          %v1889 = vpop.f32.mrf.mxu0
          %v1890 = vadd.f32 %v1762, %v1889
          %v1891 = vpop.f32.mrf.mxu0
          %v1892 = vadd.f32 %v1762, %v1891
          %1893 = vmatmul.bf16.gmra.mxu0 %v1605
          %v1894 = vpop.f32.mrf.mxu0
          %v1895 = vadd.f32 %v1762, %v1894
          %v1896 = vpop.f32.mrf.mxu0
          %v1897 = vadd.f32 %v1762, %v1896
          %1898 = vmatmul.bf16.gmra.mxu0 %v1606
          %v1899 = vpop.f32.mrf.mxu0
          %v1900 = vadd.f32 %v1762, %v1899
          %v1901 = vpop.f32.mrf.mxu0
          %v1902 = vadd.f32 %v1762, %v1901
          %1903 = vmatmul.bf16.gmra.mxu0 %v1607
          %v1904 = vpop.f32.mrf.mxu0
          %v1905 = vadd.f32 %v1762, %v1904
          %v1906 = vpop.f32.mrf.mxu0
          %v1907 = vadd.f32 %v1762, %v1906
          %1908 = vmatmul.bf16.gmra.mxu0 %v1608
          %v1909 = vpop.f32.mrf.mxu0
          %v1910 = vadd.f32 %v1762, %v1909
          %v1911 = vpop.f32.mrf.mxu0
          %v1912 = vadd.f32 %v1762, %v1911
          %1913 = vmatmul.bf16.gmra.mxu0 %v1609
          %v1914 = vpop.f32.mrf.mxu0
          %v1915 = vadd.f32 %v1762, %v1914
          %v1916 = vpop.f32.mrf.mxu0
          %v1917 = vadd.f32 %v1762, %v1916
          %1918 = vmatmul.bf16.gmra.mxu0 %v1610
          %v1919 = vpop.f32.mrf.mxu0
          %v1920 = vadd.f32 %v1762, %v1919
          %v1921 = vpop.f32.mrf.mxu0
          %v1922 = vadd.f32 %v1762, %v1921
          %1923 = vmatmul.bf16.gmra.mxu0 %v1611
          %v1924 = vpop.f32.mrf.mxu0
          %v1925 = vadd.f32 %v1762, %v1924
          %v1926 = vpop.f32.mrf.mxu0
          %v1927 = vadd.f32 %v1762, %v1926
          %1928 = vmatmul.bf16.gmra.mxu0 %v1612
          %v1929 = vpop.f32.mrf.mxu0
          %v1930 = vadd.f32 %v1762, %v1929
          %v1931 = vpop.f32.mrf.mxu0
          %v1932 = vadd.f32 %v1762, %v1931
          %1933 = vmatmul.bf16.gmra.mxu0 %v1613
          %v1934 = vpop.f32.mrf.mxu0
          %v1935 = vadd.f32 %v1762, %v1934
          %v1936 = vpop.f32.mrf.mxu0
          %v1937 = vadd.f32 %v1762, %v1936
          %1938 = vmatmul.bf16.gmra.mxu0 %v1614
          %v1939 = vpop.f32.mrf.mxu0
          %v1940 = vadd.f32 %v1762, %v1939
          %v1941 = vpop.f32.mrf.mxu0
          %v1942 = vadd.f32 %v1762, %v1941
          %1943 = vmatmul.bf16.gmra.mxu0 %v1615
          %v1944 = vpop.f32.mrf.mxu0
          %v1945 = vadd.f32 %v1762, %v1944
          %v1946 = vpop.f32.mrf.mxu0
          %v1947 = vadd.f32 %v1762, %v1946
          %1948 = vdwg.mxu0
          %1949 = vmatpush.bf16.msra.mxu0 %v1843
          %1950 = vmatpush.bf16.msra.mxu0 %v1842
          %1951 = vmatpush.bf16.msra.mxu0 %v1841
          %1952 = vmatpush.bf16.msra.mxu0 %v1840
          %1953 = vmatpush.bf16.msra.mxu0 %v1839
          %1954 = vmatpush.bf16.msra.mxu0 %v1838
          %1955 = vmatpush.bf16.msra.mxu0 %v1837
          %1956 = vmatpush.bf16.msra.mxu0 %v1836
          %1957 = vmatmul.bf16.gmra.mxu0 %v1696
          %v1958 = vpop.f32.mrf.mxu0
          %v1959 = vadd.f32 %v1870, %v1958
          %v1960 = vpop.f32.mrf.mxu0
          %v1961 = vadd.f32 %v1872, %v1960
          %1962 = vmatmul.bf16.gmra.mxu0 %v1697
          %v1963 = vpop.f32.mrf.mxu0
          %v1964 = vadd.f32 %v1875, %v1963
          %v1965 = vpop.f32.mrf.mxu0
          %v1966 = vadd.f32 %v1877, %v1965
          %1967 = vmatmul.bf16.gmra.mxu0 %v1698
          %v1968 = vpop.f32.mrf.mxu0
          %v1969 = vadd.f32 %v1880, %v1968
          %v1970 = vpop.f32.mrf.mxu0
          %v1971 = vadd.f32 %v1882, %v1970
          %1972 = vmatmul.bf16.gmra.mxu0 %v1699
          %v1973 = vpop.f32.mrf.mxu0
          %v1974 = vadd.f32 %v1885, %v1973
          %v1975 = vpop.f32.mrf.mxu0
          %v1976 = vadd.f32 %v1887, %v1975
          %1977 = vmatmul.bf16.gmra.mxu0 %v1700
          %v1978 = vpop.f32.mrf.mxu0
          %v1979 = vadd.f32 %v1890, %v1978
          %v1980 = vpop.f32.mrf.mxu0
          %v1981 = vadd.f32 %v1892, %v1980
          %1982 = vmatmul.bf16.gmra.mxu0 %v1701
          %v1983 = vpop.f32.mrf.mxu0
          %v1984 = vadd.f32 %v1895, %v1983
          %v1985 = vpop.f32.mrf.mxu0
          %v1986 = vadd.f32 %v1897, %v1985
          %1987 = vmatmul.bf16.gmra.mxu0 %v1702
          %v1988 = vpop.f32.mrf.mxu0
          %v1989 = vadd.f32 %v1900, %v1988
          %v1990 = vpop.f32.mrf.mxu0
          %v1991 = vadd.f32 %v1902, %v1990
          %1992 = vmatmul.bf16.gmra.mxu0 %v1703
          %v1993 = vpop.f32.mrf.mxu0
          %v1994 = vadd.f32 %v1905, %v1993
          %v1995 = vpop.f32.mrf.mxu0
          %v1996 = vadd.f32 %v1907, %v1995
          %1997 = vmatmul.bf16.gmra.mxu0 %v1704
          %v1998 = vpop.f32.mrf.mxu0
          %v1999 = vadd.f32 %v1910, %v1998
          %v2000 = vpop.f32.mrf.mxu0
          %v2001 = vadd.f32 %v1912, %v2000
          %2002 = vmatmul.bf16.gmra.mxu0 %v1705
          %v2003 = vpop.f32.mrf.mxu0
          %v2004 = vadd.f32 %v1915, %v2003
          %v2005 = vpop.f32.mrf.mxu0
          %v2006 = vadd.f32 %v1917, %v2005
          %2007 = vmatmul.bf16.gmra.mxu0 %v1706
          %v2008 = vpop.f32.mrf.mxu0
          %v2009 = vadd.f32 %v1920, %v2008
          %v2010 = vpop.f32.mrf.mxu0
          %v2011 = vadd.f32 %v1922, %v2010
          %2012 = vmatmul.bf16.gmra.mxu0 %v1707
          %v2013 = vpop.f32.mrf.mxu0
          %v2014 = vadd.f32 %v1925, %v2013
          %v2015 = vpop.f32.mrf.mxu0
          %v2016 = vadd.f32 %v1927, %v2015
          %2017 = vmatmul.bf16.gmra.mxu0 %v1708
          %v2018 = vpop.f32.mrf.mxu0
          %v2019 = vadd.f32 %v1930, %v2018
          %v2020 = vpop.f32.mrf.mxu0
          %v2021 = vadd.f32 %v1932, %v2020
          %2022 = vmatmul.bf16.gmra.mxu0 %v1709
          %v2023 = vpop.f32.mrf.mxu0
          %v2024 = vadd.f32 %v1935, %v2023
          %v2025 = vpop.f32.mrf.mxu0
          %v2026 = vadd.f32 %v1937, %v2025
          %2027 = vmatmul.bf16.gmra.mxu0 %v1710
          %v2028 = vpop.f32.mrf.mxu0
          %v2029 = vadd.f32 %v1940, %v2028
          %v2030 = vpop.f32.mrf.mxu0
          %v2031 = vadd.f32 %v1942, %v2030
          %2032 = vmatmul.bf16.gmra.mxu0 %v1711
          %v2033 = vpop.f32.mrf.mxu0
          %v2034 = vadd.f32 %v1945, %v2033
          %v2035 = vpop.f32.mrf.mxu0
          %v2036 = vadd.f32 %v1947, %v2035
          %2037 = vdwg.mxu0
          %s2038 = sld [smem:[#allocation3]]
          %vm2039 = vcmp.gt.f32.partialorder %v1959, 0.0
          %vm2040 = vcmp.gt.f32.partialorder %v1961, 0.0
          %vm2041 = vcmp.gt.f32.partialorder %v1964, 0.0
          %vm2042 = vcmp.gt.f32.partialorder %v1966, 0.0
          %vm2043 = vcmp.gt.f32.partialorder %v1969, 0.0
          %vm2044 = vcmp.gt.f32.partialorder %v1971, 0.0
          %vm2045 = vcmp.gt.f32.partialorder %v1974, 0.0
          %vm2046 = vcmp.gt.f32.partialorder %v1976, 0.0
          %vm2047 = vcmp.gt.f32.partialorder %v1979, 0.0
          %vm2048 = vcmp.gt.f32.partialorder %v1981, 0.0
          %vm2049 = vcmp.gt.f32.partialorder %v1984, 0.0
          %vm2050 = vcmp.gt.f32.partialorder %v1986, 0.0
          %vm2051 = vcmp.gt.f32.partialorder %v1989, 0.0
          %vm2052 = vcmp.gt.f32.partialorder %v1991, 0.0
          %vm2053 = vcmp.gt.f32.partialorder %v1994, 0.0
          %vm2054 = vcmp.gt.f32.partialorder %v1996, 0.0
          %vm2055 = vcmp.gt.f32.partialorder %v1999, 0.0
          %vm2056 = vcmp.gt.f32.partialorder %v2001, 0.0
          %vm2057 = vcmp.gt.f32.partialorder %v2004, 0.0
          %vm2058 = vcmp.gt.f32.partialorder %v2006, 0.0
          %vm2059 = vcmp.gt.f32.partialorder %v2009, 0.0
          %vm2060 = vcmp.gt.f32.partialorder %v2011, 0.0
          %vm2061 = vcmp.gt.f32.partialorder %v2014, 0.0
          %vm2062 = vcmp.gt.f32.partialorder %v2016, 0.0
          %vm2063 = vcmp.gt.f32.partialorder %v2019, 0.0
          %vm2064 = vcmp.gt.f32.partialorder %v2021, 0.0
          %vm2065 = vcmp.gt.f32.partialorder %v2024, 0.0
          %vm2066 = vcmp.gt.f32.partialorder %v2026, 0.0
          %vm2067 = vcmp.gt.f32.partialorder %v2029, 0.0
          %vm2068 = vcmp.gt.f32.partialorder %v2031, 0.0
          %vm2069 = vcmp.gt.f32.partialorder %v2034, 0.0
          %vm2070 = vcmp.gt.f32.partialorder %v2036, 0.0
          %v2071 = vstv %s2038
          %v2072 = vmul.f32 %v2071, %v1959
          %v2073 = vmul.f32 %v2071, %v1961
          %v2074 = vmul.f32 %v2071, %v1964
          %v2075 = vmul.f32 %v2071, %v1966
          %v2076 = vmul.f32 %v2071, %v1969
          %v2077 = vmul.f32 %v2071, %v1971
          %v2078 = vmul.f32 %v2071, %v1974
          %v2079 = vmul.f32 %v2071, %v1976
          %v2080 = vmul.f32 %v2071, %v1979
          %v2081 = vmul.f32 %v2071, %v1981
          %v2082 = vmul.f32 %v2071, %v1984
          %v2083 = vmul.f32 %v2071, %v1986
          %v2084 = vmul.f32 %v2071, %v1989
          %v2085 = vmul.f32 %v2071, %v1991
          %v2086 = vmul.f32 %v2071, %v1994
          %v2087 = vmul.f32 %v2071, %v1996
          %v2088 = vmul.f32 %v2071, %v1999
          %v2089 = vmul.f32 %v2071, %v2001
          %v2090 = vmul.f32 %v2071, %v2004
          %v2091 = vmul.f32 %v2071, %v2006
          %v2092 = vmul.f32 %v2071, %v2009
          %v2093 = vmul.f32 %v2071, %v2011
          %v2094 = vmul.f32 %v2071, %v2014
          %v2095 = vmul.f32 %v2071, %v2016
          %v2096 = vmul.f32 %v2071, %v2019
          %v2097 = vmul.f32 %v2071, %v2021
          %v2098 = vmul.f32 %v2071, %v2024
          %v2099 = vmul.f32 %v2071, %v2026
          %v2100 = vmul.f32 %v2071, %v2029
          %v2101 = vmul.f32 %v2071, %v2031
          %v2102 = vmul.f32 %v2071, %v2034
          %v2103 = vmul.f32 %v2071, %v2036
          %v2104 = vsel %vm2039, %v1959, %v2072
          %v2105 = vsel %vm2040, %v1961, %v2073
          %v2106 = vsel %vm2041, %v1964, %v2074
          %v2107 = vsel %vm2042, %v1966, %v2075
          %v2108 = vsel %vm2043, %v1969, %v2076
          %v2109 = vsel %vm2044, %v1971, %v2077
          %v2110 = vsel %vm2045, %v1974, %v2078
          %v2111 = vsel %vm2046, %v1976, %v2079
          %v2112 = vsel %vm2047, %v1979, %v2080
          %v2113 = vsel %vm2048, %v1981, %v2081
          %v2114 = vsel %vm2049, %v1984, %v2082
          %v2115 = vsel %vm2050, %v1986, %v2083
          %v2116 = vsel %vm2051, %v1989, %v2084
          %v2117 = vsel %vm2052, %v1991, %v2085
          %v2118 = vsel %vm2053, %v1994, %v2086
          %v2119 = vsel %vm2054, %v1996, %v2087
          %v2120 = vsel %vm2055, %v1999, %v2088
          %v2121 = vsel %vm2056, %v2001, %v2089
          %v2122 = vsel %vm2057, %v2004, %v2090
          %v2123 = vsel %vm2058, %v2006, %v2091
          %v2124 = vsel %vm2059, %v2009, %v2092
          %v2125 = vsel %vm2060, %v2011, %v2093
          %v2126 = vsel %vm2061, %v2014, %v2094
          %v2127 = vsel %vm2062, %v2016, %v2095
          %v2128 = vsel %vm2063, %v2019, %v2096
          %v2129 = vsel %vm2064, %v2021, %v2097
          %v2130 = vsel %vm2065, %v2024, %v2098
          %v2131 = vsel %vm2066, %v2026, %v2099
          %v2132 = vsel %vm2067, %v2029, %v2100
          %v2133 = vsel %vm2068, %v2031, %v2101
          %v2134 = vsel %vm2069, %v2034, %v2102
          %v2135 = vsel %vm2070, %v2036, %v2103
          %v2136 = vpack.c.bf16 %v2105, %v2104
          %v2137 = vpack.c.bf16 %v2107, %v2106
          %v2138 = vpack.c.bf16 %v2109, %v2108
          %v2139 = vpack.c.bf16 %v2111, %v2110
          %v2140 = vpack.c.bf16 %v2113, %v2112
          %v2141 = vpack.c.bf16 %v2115, %v2114
          %v2142 = vpack.c.bf16 %v2117, %v2116
          %v2143 = vpack.c.bf16 %v2119, %v2118
          %v2144 = vpack.c.bf16 %v2121, %v2120
          %v2145 = vpack.c.bf16 %v2123, %v2122
          %v2146 = vpack.c.bf16 %v2125, %v2124
          %v2147 = vpack.c.bf16 %v2127, %v2126
          %v2148 = vpack.c.bf16 %v2129, %v2128
          %v2149 = vpack.c.bf16 %v2131, %v2130
          %v2150 = vpack.c.bf16 %v2133, %v2132
          %v2151 = vpack.c.bf16 %v2135, %v2134
          %v2152 = vld [vmem:[#allocation11] sm:$0xf]
          %v2153 = vld [vmem:[#allocation11 + $0x4] sm:$0xf]
          %v2154 = vld [vmem:[#allocation11 + $0x8] sm:$0xf]
          %v2155 = vld [vmem:[#allocation11 + $0xc] sm:$0xf]
          %v2156 = vld [vmem:[#allocation11 + $0x10] sm:$0xf]
          %v2157 = vld [vmem:[#allocation11 + $0x14] sm:$0xf]
          %v2158 = vld [vmem:[#allocation11 + $0x18] sm:$0xf]
          %v2159 = vld [vmem:[#allocation11 + $0x1c] sm:$0xf]
          %v2160 = vld [vmem:[#allocation11 + $0x20] sm:$0xf]
          %v2161 = vld [vmem:[#allocation11 + $0x24] sm:$0xf]
          %v2162 = vld [vmem:[#allocation11 + $0x28] sm:$0xf]
          %v2163 = vld [vmem:[#allocation11 + $0x2c] sm:$0xf]
          %v2164 = vld [vmem:[#allocation11 + $0x30] sm:$0xf]
          %v2165 = vld [vmem:[#allocation11 + $0x34] sm:$0xf]
          %v2166 = vld [vmem:[#allocation11 + $0x38] sm:$0xf]
          %v2167 = vld [vmem:[#allocation11 + $0x3c] sm:$0xf]
          %v2184 = vunpack.c.l.b16 %v2152
          %v2185 = vunpack.c.l.b16 %v2153
          %v2186 = vunpack.c.l.b16 %v2154
          %v2187 = vunpack.c.l.b16 %v2155
          %v2188 = vunpack.c.l.b16 %v2156
          %v2189 = vunpack.c.l.b16 %v2157
          %v2190 = vunpack.c.l.b16 %v2158
          %v2191 = vunpack.c.l.b16 %v2159
          %v2192 = vunpack.c.l.b16 %v2160
          %v2193 = vunpack.c.l.b16 %v2161
          %v2194 = vunpack.c.l.b16 %v2162
          %v2195 = vunpack.c.l.b16 %v2163
          %v2196 = vunpack.c.l.b16 %v2164
          %v2197 = vunpack.c.l.b16 %v2165
          %v2198 = vunpack.c.l.b16 %v2166
          %v2199 = vunpack.c.l.b16 %v2167
          %v2200 = vpack.c.b16 %v2185, %v2184
          %v2201 = vpack.c.b16 %v2187, %v2186
          %v2202 = vpack.c.b16 %v2189, %v2188
          %v2203 = vpack.c.b16 %v2191, %v2190
          %v2204 = vpack.c.b16 %v2193, %v2192
          %v2205 = vpack.c.b16 %v2195, %v2194
          %v2206 = vpack.c.b16 %v2197, %v2196
          %v2207 = vpack.c.b16 %v2199, %v2198
          %2216 = vmatpush.bf16.msra.mxu0 %v2207
          %2217 = vmatpush.bf16.msra.mxu0 %v2206
          %2218 = vmatpush.bf16.msra.mxu0 %v2205
          %2219 = vmatpush.bf16.msra.mxu0 %v2204
          %2220 = vmatpush.bf16.msra.mxu0 %v2203
          %2221 = vmatpush.bf16.msra.mxu0 %v2202
          %2222 = vmatpush.bf16.msra.mxu0 %v2201
          %2223 = vmatpush.bf16.msra.mxu0 %v2200
          %2224 = vmatmul.bf16.gmra.mxu0 %v2136
          %v2225 = vpop.f32.mrf.mxu0
          %v2226 = vadd.f32 0.0, %v2225
          %v2227 = vpop.f32.mrf.mxu0
          %v2228 = vadd.f32 0.0, %v2227
          %2229 = vmatmul.bf16.gmra.mxu0 %v2137
          %v2230 = vpop.f32.mrf.mxu0
          %v2231 = vadd.f32 0.0, %v2230
          %v2232 = vpop.f32.mrf.mxu0
          %v2233 = vadd.f32 0.0, %v2232
          %2234 = vmatmul.bf16.gmra.mxu0 %v2138
          %v2235 = vpop.f32.mrf.mxu0
          %v2236 = vadd.f32 0.0, %v2235
          %v2237 = vpop.f32.mrf.mxu0
          %v2238 = vadd.f32 0.0, %v2237
          %2239 = vmatmul.bf16.gmra.mxu0 %v2139
          %v2240 = vpop.f32.mrf.mxu0
          %v2241 = vadd.f32 0.0, %v2240
          %v2242 = vpop.f32.mrf.mxu0
          %v2243 = vadd.f32 0.0, %v2242
          %2244 = vmatmul.bf16.gmra.mxu0 %v2140
          %v2245 = vpop.f32.mrf.mxu0
          %v2246 = vadd.f32 0.0, %v2245
          %v2247 = vpop.f32.mrf.mxu0
          %v2248 = vadd.f32 0.0, %v2247
          %2249 = vmatmul.bf16.gmra.mxu0 %v2141
          %v2250 = vpop.f32.mrf.mxu0
          %v2251 = vadd.f32 0.0, %v2250
          %v2252 = vpop.f32.mrf.mxu0
          %v2253 = vadd.f32 0.0, %v2252
          %2254 = vmatmul.bf16.gmra.mxu0 %v2142
          %v2255 = vpop.f32.mrf.mxu0
          %v2256 = vadd.f32 0.0, %v2255
          %v2257 = vpop.f32.mrf.mxu0
          %v2258 = vadd.f32 0.0, %v2257
          %2259 = vmatmul.bf16.gmra.mxu0 %v2143
          %v2260 = vpop.f32.mrf.mxu0
          %v2261 = vadd.f32 0.0, %v2260
          %v2262 = vpop.f32.mrf.mxu0
          %v2263 = vadd.f32 0.0, %v2262
          %2264 = vmatmul.bf16.gmra.mxu0 %v2144
          %v2265 = vpop.f32.mrf.mxu0
          %v2266 = vadd.f32 0.0, %v2265
          %v2267 = vpop.f32.mrf.mxu0
          %v2268 = vadd.f32 0.0, %v2267
          %2269 = vmatmul.bf16.gmra.mxu0 %v2145
          %v2270 = vpop.f32.mrf.mxu0
          %v2271 = vadd.f32 0.0, %v2270
          %v2272 = vpop.f32.mrf.mxu0
          %v2273 = vadd.f32 0.0, %v2272
          %2274 = vmatmul.bf16.gmra.mxu0 %v2146
          %v2275 = vpop.f32.mrf.mxu0
          %v2276 = vadd.f32 0.0, %v2275
          %v2277 = vpop.f32.mrf.mxu0
          %v2278 = vadd.f32 0.0, %v2277
          %2279 = vmatmul.bf16.gmra.mxu0 %v2147
          %v2280 = vpop.f32.mrf.mxu0
          %v2281 = vadd.f32 0.0, %v2280
          %v2282 = vpop.f32.mrf.mxu0
          %v2283 = vadd.f32 0.0, %v2282
          %2284 = vmatmul.bf16.gmra.mxu0 %v2148
          %v2285 = vpop.f32.mrf.mxu0
          %v2286 = vadd.f32 0.0, %v2285
          %v2287 = vpop.f32.mrf.mxu0
          %v2288 = vadd.f32 0.0, %v2287
          %2289 = vmatmul.bf16.gmra.mxu0 %v2149
          %v2290 = vpop.f32.mrf.mxu0
          %v2291 = vadd.f32 0.0, %v2290
          %v2292 = vpop.f32.mrf.mxu0
          %v2293 = vadd.f32 0.0, %v2292
          %2294 = vmatmul.bf16.gmra.mxu0 %v2150
          %v2295 = vpop.f32.mrf.mxu0
          %v2296 = vadd.f32 0.0, %v2295
          %v2297 = vpop.f32.mrf.mxu0
          %v2298 = vadd.f32 0.0, %v2297
          %2299 = vmatmul.bf16.gmra.mxu0 %v2151
          %v2300 = vpop.f32.mrf.mxu0
          %v2301 = vadd.f32 0.0, %v2300
          %v2302 = vpop.f32.mrf.mxu0
          %v2303 = vadd.f32 0.0, %v2302
          %2304 = vdwg.mxu0
          %v2305 = vpack.c.bf16 %v2226, %v2226
          %v2306 = vpack.c.bf16 %v2228, %v2228
          %v2307 = vpack.c.bf16 %v2231, %v2231
          %v2308 = vpack.c.bf16 %v2233, %v2233
          %v2309 = vpack.c.bf16 %v2236, %v2236
          %v2310 = vpack.c.bf16 %v2238, %v2238
          %v2311 = vpack.c.bf16 %v2241, %v2241
          %v2312 = vpack.c.bf16 %v2243, %v2243
          %v2313 = vpack.c.bf16 %v2246, %v2246
          %v2314 = vpack.c.bf16 %v2248, %v2248
          %v2315 = vpack.c.bf16 %v2251, %v2251
          %v2316 = vpack.c.bf16 %v2253, %v2253
          %v2317 = vpack.c.bf16 %v2256, %v2256
          %v2318 = vpack.c.bf16 %v2258, %v2258
          %v2319 = vpack.c.bf16 %v2261, %v2261
          %v2320 = vpack.c.bf16 %v2263, %v2263
          %v2321 = vpack.c.bf16 %v2266, %v2266
          %v2322 = vpack.c.bf16 %v2268, %v2268
          %v2323 = vpack.c.bf16 %v2271, %v2271
          %v2324 = vpack.c.bf16 %v2273, %v2273
          %v2325 = vpack.c.bf16 %v2276, %v2276
          %v2326 = vpack.c.bf16 %v2278, %v2278
          %v2327 = vpack.c.bf16 %v2281, %v2281
          %v2328 = vpack.c.bf16 %v2283, %v2283
          %v2329 = vpack.c.bf16 %v2286, %v2286
          %v2330 = vpack.c.bf16 %v2288, %v2288
          %v2331 = vpack.c.bf16 %v2291, %v2291
          %v2332 = vpack.c.bf16 %v2293, %v2293
          %v2333 = vpack.c.bf16 %v2296, %v2296
          %v2334 = vpack.c.bf16 %v2298, %v2298
          %v2335 = vpack.c.bf16 %v2301, %v2301
          %v2336 = vpack.c.bf16 %v2303, %v2303
          %2337 = vst [vmem:[%s578] sm:$0xf] %v2305
          %2338 = vst [vmem:[%s578 + $0x4] sm:$0xf] %v2306
          %2339 = vst [vmem:[%s578 + $0x8] sm:$0xf] %v2307
          %2340 = vst [vmem:[%s578 + $0xc] sm:$0xf] %v2308
          %2341 = vst [vmem:[%s578 + $0x10] sm:$0xf] %v2309
          %2342 = vst [vmem:[%s578 + $0x14] sm:$0xf] %v2310
          %2343 = vst [vmem:[%s578 + $0x18] sm:$0xf] %v2311
          %2344 = vst [vmem:[%s578 + $0x1c] sm:$0xf] %v2312
          %2345 = vst [vmem:[%s578 + $0x20] sm:$0xf] %v2313
          %2346 = vst [vmem:[%s578 + $0x24] sm:$0xf] %v2314
          %2347 = vst [vmem:[%s578 + $0x28] sm:$0xf] %v2315
          %2348 = vst [vmem:[%s578 + $0x2c] sm:$0xf] %v2316
          %2349 = vst [vmem:[%s578 + $0x30] sm:$0xf] %v2317
          %2350 = vst [vmem:[%s578 + $0x34] sm:$0xf] %v2318
          %2351 = vst [vmem:[%s578 + $0x38] sm:$0xf] %v2319
          %2352 = vst [vmem:[%s578 + $0x3c] sm:$0xf] %v2320
          %2353 = vst [vmem:[%s578 + $0x40] sm:$0xf] %v2321
          %2354 = vst [vmem:[%s578 + $0x44] sm:$0xf] %v2322
          %2355 = vst [vmem:[%s578 + $0x48] sm:$0xf] %v2323
          %2356 = vst [vmem:[%s578 + $0x4c] sm:$0xf] %v2324
          %2357 = vst [vmem:[%s578 + $0x50] sm:$0xf] %v2325
          %2358 = vst [vmem:[%s578 + $0x54] sm:$0xf] %v2326
          %2359 = vst [vmem:[%s578 + $0x58] sm:$0xf] %v2327
          %2360 = vst [vmem:[%s578 + $0x5c] sm:$0xf] %v2328
          %2361 = vst [vmem:[%s578 + $0x60] sm:$0xf] %v2329
          %2362 = vst [vmem:[%s578 + $0x64] sm:$0xf] %v2330
          %2363 = vst [vmem:[%s578 + $0x68] sm:$0xf] %v2331
          %2364 = vst [vmem:[%s578 + $0x6c] sm:$0xf] %v2332
          %2365 = vst [vmem:[%s578 + $0x70] sm:$0xf] %v2333
          %2366 = vst [vmem:[%s578 + $0x74] sm:$0xf] %v2334
          %2367 = vst [vmem:[%s578 + $0x78] sm:$0xf] %v2335
          %2368 = vst [vmem:[%s578 + $0x7c] sm:$0xf] %v2336
          %v2369 = vld [vmem:[#allocation13] sm:$0xf]
          %v2370 = vld [vmem:[#allocation13 + $0x4] sm:$0xf]
          %v2371 = vld [vmem:[#allocation13 + $0x8] sm:$0xf]
          %v2372 = vld [vmem:[#allocation13 + $0xc] sm:$0xf]
          %v2373 = vld [vmem:[#allocation13 + $0x10] sm:$0xf]
          %v2374 = vld [vmem:[#allocation13 + $0x14] sm:$0xf]
          %v2375 = vld [vmem:[#allocation13 + $0x18] sm:$0xf]
          %v2376 = vld [vmem:[#allocation13 + $0x1c] sm:$0xf]
          %v2377 = vld [vmem:[#allocation13 + $0x20] sm:$0xf]
          %v2378 = vld [vmem:[#allocation13 + $0x24] sm:$0xf]
          %v2379 = vld [vmem:[#allocation13 + $0x28] sm:$0xf]
          %v2380 = vld [vmem:[#allocation13 + $0x2c] sm:$0xf]
          %v2381 = vld [vmem:[#allocation13 + $0x30] sm:$0xf]
          %v2382 = vld [vmem:[#allocation13 + $0x34] sm:$0xf]
          %v2383 = vld [vmem:[#allocation13 + $0x38] sm:$0xf]
          %v2384 = vld [vmem:[#allocation13 + $0x3c] sm:$0xf]
          %v2401 = vunpack.c.l.b16 %v2369
          %v2402 = vunpack.c.l.b16 %v2370
          %v2403 = vunpack.c.l.b16 %v2371
          %v2404 = vunpack.c.l.b16 %v2372
          %v2405 = vunpack.c.l.b16 %v2373
          %v2406 = vunpack.c.l.b16 %v2374
          %v2407 = vunpack.c.l.b16 %v2375
          %v2408 = vunpack.c.l.b16 %v2376
          %v2409 = vunpack.c.l.b16 %v2377
          %v2410 = vunpack.c.l.b16 %v2378
          %v2411 = vunpack.c.l.b16 %v2379
          %v2412 = vunpack.c.l.b16 %v2380
          %v2413 = vunpack.c.l.b16 %v2381
          %v2414 = vunpack.c.l.b16 %v2382
          %v2415 = vunpack.c.l.b16 %v2383
          %v2416 = vunpack.c.l.b16 %v2384
          %v2417 = vpack.c.b16 %v2402, %v2401
          %v2418 = vpack.c.b16 %v2404, %v2403
          %v2419 = vpack.c.b16 %v2406, %v2405
          %v2420 = vpack.c.b16 %v2408, %v2407
          %v2421 = vpack.c.b16 %v2410, %v2409
          %v2422 = vpack.c.b16 %v2412, %v2411
          %v2423 = vpack.c.b16 %v2414, %v2413
          %v2424 = vpack.c.b16 %v2416, %v2415
          %2433 = vmatpush.bf16.msra.mxu0 %v2424
          %2434 = vmatpush.bf16.msra.mxu0 %v2423
          %2435 = vmatpush.bf16.msra.mxu0 %v2422
          %2436 = vmatpush.bf16.msra.mxu0 %v2421
          %2437 = vmatpush.bf16.msra.mxu0 %v2420
          %2438 = vmatpush.bf16.msra.mxu0 %v2419
          %2439 = vmatpush.bf16.msra.mxu0 %v2418
          %2440 = vmatpush.bf16.msra.mxu0 %v2417
          %2441 = vmatmul.bf16.gmra.mxu0 %v2136
          %v2442 = vpop.f32.mrf.mxu0
          %v2443 = vadd.f32 0.0, %v2442
          %v2444 = vpop.f32.mrf.mxu0
          %v2445 = vadd.f32 0.0, %v2444
          %2446 = vmatmul.bf16.gmra.mxu0 %v2137
          %v2447 = vpop.f32.mrf.mxu0
          %v2448 = vadd.f32 0.0, %v2447
          %v2449 = vpop.f32.mrf.mxu0
          %v2450 = vadd.f32 0.0, %v2449
          %2451 = vmatmul.bf16.gmra.mxu0 %v2138
          %v2452 = vpop.f32.mrf.mxu0
          %v2453 = vadd.f32 0.0, %v2452
          %v2454 = vpop.f32.mrf.mxu0
          %v2455 = vadd.f32 0.0, %v2454
          %2456 = vmatmul.bf16.gmra.mxu0 %v2139
          %v2457 = vpop.f32.mrf.mxu0
          %v2458 = vadd.f32 0.0, %v2457
          %v2459 = vpop.f32.mrf.mxu0
          %v2460 = vadd.f32 0.0, %v2459
          %2461 = vmatmul.bf16.gmra.mxu0 %v2140
          %v2462 = vpop.f32.mrf.mxu0
          %v2463 = vadd.f32 0.0, %v2462
          %v2464 = vpop.f32.mrf.mxu0
          %v2465 = vadd.f32 0.0, %v2464
          %2466 = vmatmul.bf16.gmra.mxu0 %v2141
          %v2467 = vpop.f32.mrf.mxu0
          %v2468 = vadd.f32 0.0, %v2467
          %v2469 = vpop.f32.mrf.mxu0
          %v2470 = vadd.f32 0.0, %v2469
          %2471 = vmatmul.bf16.gmra.mxu0 %v2142
          %v2472 = vpop.f32.mrf.mxu0
          %v2473 = vadd.f32 0.0, %v2472
          %v2474 = vpop.f32.mrf.mxu0
          %v2475 = vadd.f32 0.0, %v2474
          %2476 = vmatmul.bf16.gmra.mxu0 %v2143
          %v2477 = vpop.f32.mrf.mxu0
          %v2478 = vadd.f32 0.0, %v2477
          %v2479 = vpop.f32.mrf.mxu0
          %v2480 = vadd.f32 0.0, %v2479
          %2481 = vmatmul.bf16.gmra.mxu0 %v2144
          %v2482 = vpop.f32.mrf.mxu0
          %v2483 = vadd.f32 0.0, %v2482
          %v2484 = vpop.f32.mrf.mxu0
          %v2485 = vadd.f32 0.0, %v2484
          %2486 = vmatmul.bf16.gmra.mxu0 %v2145
          %v2487 = vpop.f32.mrf.mxu0
          %v2488 = vadd.f32 0.0, %v2487
          %v2489 = vpop.f32.mrf.mxu0
          %v2490 = vadd.f32 0.0, %v2489
          %2491 = vmatmul.bf16.gmra.mxu0 %v2146
          %v2492 = vpop.f32.mrf.mxu0
          %v2493 = vadd.f32 0.0, %v2492
          %v2494 = vpop.f32.mrf.mxu0
          %v2495 = vadd.f32 0.0, %v2494
          %2496 = vmatmul.bf16.gmra.mxu0 %v2147
          %v2497 = vpop.f32.mrf.mxu0
          %v2498 = vadd.f32 0.0, %v2497
          %v2499 = vpop.f32.mrf.mxu0
          %v2500 = vadd.f32 0.0, %v2499
          %2501 = vmatmul.bf16.gmra.mxu0 %v2148
          %v2502 = vpop.f32.mrf.mxu0
          %v2503 = vadd.f32 0.0, %v2502
          %v2504 = vpop.f32.mrf.mxu0
          %v2505 = vadd.f32 0.0, %v2504
          %2506 = vmatmul.bf16.gmra.mxu0 %v2149
          %v2507 = vpop.f32.mrf.mxu0
          %v2508 = vadd.f32 0.0, %v2507
          %v2509 = vpop.f32.mrf.mxu0
          %v2510 = vadd.f32 0.0, %v2509
          %2511 = vmatmul.bf16.gmra.mxu0 %v2150
          %v2512 = vpop.f32.mrf.mxu0
          %v2513 = vadd.f32 0.0, %v2512
          %v2514 = vpop.f32.mrf.mxu0
          %v2515 = vadd.f32 0.0, %v2514
          %2516 = vmatmul.bf16.gmra.mxu0 %v2151
          %v2517 = vpop.f32.mrf.mxu0
          %v2518 = vadd.f32 0.0, %v2517
          %v2519 = vpop.f32.mrf.mxu0
          %v2520 = vadd.f32 0.0, %v2519
          %2521 = vdwg.mxu0
          %v2522 = vpack.c.bf16 %v2443, %v2443
          %v2523 = vpack.c.bf16 %v2445, %v2445
          %v2524 = vpack.c.bf16 %v2448, %v2448
          %v2525 = vpack.c.bf16 %v2450, %v2450
          %v2526 = vpack.c.bf16 %v2453, %v2453
          %v2527 = vpack.c.bf16 %v2455, %v2455
          %v2528 = vpack.c.bf16 %v2458, %v2458
          %v2529 = vpack.c.bf16 %v2460, %v2460
          %v2530 = vpack.c.bf16 %v2463, %v2463
          %v2531 = vpack.c.bf16 %v2465, %v2465
          %v2532 = vpack.c.bf16 %v2468, %v2468
          %v2533 = vpack.c.bf16 %v2470, %v2470
          %v2534 = vpack.c.bf16 %v2473, %v2473
          %v2535 = vpack.c.bf16 %v2475, %v2475
          %v2536 = vpack.c.bf16 %v2478, %v2478
          %v2537 = vpack.c.bf16 %v2480, %v2480
          %v2538 = vpack.c.bf16 %v2483, %v2483
          %v2539 = vpack.c.bf16 %v2485, %v2485
          %v2540 = vpack.c.bf16 %v2488, %v2488
          %v2541 = vpack.c.bf16 %v2490, %v2490
          %v2542 = vpack.c.bf16 %v2493, %v2493
          %v2543 = vpack.c.bf16 %v2495, %v2495
          %v2544 = vpack.c.bf16 %v2498, %v2498
          %v2545 = vpack.c.bf16 %v2500, %v2500
          %v2546 = vpack.c.bf16 %v2503, %v2503
          %v2547 = vpack.c.bf16 %v2505, %v2505
          %v2548 = vpack.c.bf16 %v2508, %v2508
          %v2549 = vpack.c.bf16 %v2510, %v2510
          %v2550 = vpack.c.bf16 %v2513, %v2513
          %v2551 = vpack.c.bf16 %v2515, %v2515
          %v2552 = vpack.c.bf16 %v2518, %v2518
          %v2553 = vpack.c.bf16 %v2520, %v2520
          %2554 = vst [vmem:[%s585] sm:$0xf] %v2522
          %2555 = vst [vmem:[%s585 + $0x4] sm:$0xf] %v2523
          %2556 = vst [vmem:[%s585 + $0x8] sm:$0xf] %v2524
          %2557 = vst [vmem:[%s585 + $0xc] sm:$0xf] %v2525
          %2558 = vst [vmem:[%s585 + $0x10] sm:$0xf] %v2526
          %2559 = vst [vmem:[%s585 + $0x14] sm:$0xf] %v2527
          %2560 = vst [vmem:[%s585 + $0x18] sm:$0xf] %v2528
          %2561 = vst [vmem:[%s585 + $0x1c] sm:$0xf] %v2529
          %2562 = vst [vmem:[%s585 + $0x20] sm:$0xf] %v2530
          %2563 = vst [vmem:[%s585 + $0x24] sm:$0xf] %v2531
          %2564 = vst [vmem:[%s585 + $0x28] sm:$0xf] %v2532
          %2565 = vst [vmem:[%s585 + $0x2c] sm:$0xf] %v2533
          %2566 = vst [vmem:[%s585 + $0x30] sm:$0xf] %v2534
          %2567 = vst [vmem:[%s585 + $0x34] sm:$0xf] %v2535
          %2568 = vst [vmem:[%s585 + $0x38] sm:$0xf] %v2536
          %2569 = vst [vmem:[%s585 + $0x3c] sm:$0xf] %v2537
          %2570 = vst [vmem:[%s585 + $0x40] sm:$0xf] %v2538
          %2571 = vst [vmem:[%s585 + $0x44] sm:$0xf] %v2539
          %2572 = vst [vmem:[%s585 + $0x48] sm:$0xf] %v2540
          %2573 = vst [vmem:[%s585 + $0x4c] sm:$0xf] %v2541
          %2574 = vst [vmem:[%s585 + $0x50] sm:$0xf] %v2542
          %2575 = vst [vmem:[%s585 + $0x54] sm:$0xf] %v2543
          %2576 = vst [vmem:[%s585 + $0x58] sm:$0xf] %v2544
          %2577 = vst [vmem:[%s585 + $0x5c] sm:$0xf] %v2545
          %2578 = vst [vmem:[%s585 + $0x60] sm:$0xf] %v2546
          %2579 = vst [vmem:[%s585 + $0x64] sm:$0xf] %v2547
          %2580 = vst [vmem:[%s585 + $0x68] sm:$0xf] %v2548
          %2581 = vst [vmem:[%s585 + $0x6c] sm:$0xf] %v2549
          %2582 = vst [vmem:[%s585 + $0x70] sm:$0xf] %v2550
          %2583 = vst [vmem:[%s585 + $0x74] sm:$0xf] %v2551
          %2584 = vst [vmem:[%s585 + $0x78] sm:$0xf] %v2552
          %2585 = vst [vmem:[%s585 + $0x7c] sm:$0xf] %v2553
        $region107: #{tpu_custom_call.1} parent=74 // pred_fallthru
          _
        %s2586 = sand.u32 %s267, 1
        %s2587 = scalar_lea.sflag [#allocation7], %s2586
        %s2588 = sand.u32 %s267, 1
        %s2589 = smul.addr %s2588, 128
        %s2590 = scalar_lea.vmem [#allocation14], %s2589
        %s2591 = sand.u32 %s293, 1
        %s2592 = scalar_lea.sflag [#allocation16], %s2591
        %s2593 = sand.u32 %s293, 1
        %s2594 = smul.addr %s2593, 128
        %s2595 = scalar_lea.vmem [#allocation15], %s2594
        // Predicated region
        $region108: #{tpu_custom_call.1} parent=74 // pred_check
          %p2596 = pneg %p277
        $region109: #{tpu_custom_call.1} parent=74 // pred_check_branch
          %2598 = sbr.rel (%p2596) target = $region111
        $region110: #{tpu_custom_call.1} parent=74 // pred_region
          %s2599 = smul.u32 32, %s40
          %2601 = vsyncadd %s2587, 0
          %s2602 = smul.addr %s2599, 4
          %s2603 = scalar_lea.hbm %s9, %s2602
          %s2604 = sshll.u32 %s2590, 4
          %s2605 = int_to_ptr.vmem [resolvable:$true] %s2604
          %s2606 = sshll.u32 %s2603, 4
          %s2607 = int_to_ptr.hbm [resolvable:$true] %s2606
          %2612 = dma.vmem_to_hbm [thread:$0]  %s2605, 2048, %s2607, %s2587, 64, 64, 4
        $region111: #{tpu_custom_call.1} parent=74 // pred_fallthru
          _
        // Predicated region
        $region112: #{tpu_custom_call.1} parent=74 // pred_check
          %p2613 = pneg %p303
        $region113: #{tpu_custom_call.1} parent=74 // pred_check_branch
          %2615 = sbr.rel (%p2613) target = $region115
        $region114: #{tpu_custom_call.1} parent=74 // pred_region
          %s2616 = smul.u32 32, %s40
          %2618 = vsyncadd %s2592, 0
          %s2619 = smul.addr %s2616, 4
          %s2620 = scalar_lea.hbm %s10, %s2619
          %s2621 = sshll.u32 %s2595, 4
          %s2622 = int_to_ptr.vmem [resolvable:$true] %s2621
          %s2623 = sshll.u32 %s2620, 4
          %s2624 = int_to_ptr.hbm [resolvable:$true] %s2623
          %2629 = dma.vmem_to_hbm [thread:$0]  %s2622, 2048, %s2624, %s2592, 64, 64, 4
        $region115: #{tpu_custom_call.1} parent=74 // pred_fallthru
          _
      $region75: #{tpu_custom_call.1} parent=5 // pred_fallthru
        _
      %p2630 = scmp.le.s32.totalorder 2, %s31
      // Predicated region
      $region116: #{tpu_custom_call.1} parent=5 // pred_check
        %p2631 = pneg %p2630
      $region117: #{tpu_custom_call.1} parent=5 // pred_check_branch
        %2633 = sbr.rel (%p2631) target = $region119
      $region118: #{tpu_custom_call.1} parent=5 // pred_region
        %s2634 = ssub.s32 %s31, 2
        // Predicated region
        $region120: #{tpu_custom_call.1} parent=118 // pred_check
          %p2635 = pneg %p283
        $region121: #{tpu_custom_call.1} parent=118 // pred_check_branch
          %2637 = sbr.rel (%p2635) target = $region123
        $region122: #{tpu_custom_call.1} parent=118 // pred_region
          %s2638 = sand.u32 %s268, 1
          %s2639 = scalar_lea.sflag [#allocation7], %s2638
          %s2640 = sand.u32 %s268, 1
          %s2641 = smul.addr %s2640, 128
          %s2642 = scalar_lea.vmem [#allocation14], %s2641
          %2644 = dma.done %s2639, 2048
        $region123: #{tpu_custom_call.1} parent=118 // pred_fallthru
          _
        // Predicated region
        $region124: #{tpu_custom_call.1} parent=118 // pred_check
          %p2645 = pneg %p309
        $region125: #{tpu_custom_call.1} parent=118 // pred_check_branch
          %2647 = sbr.rel (%p2645) target = $region127
        $region126: #{tpu_custom_call.1} parent=118 // pred_region
          %s2648 = sand.u32 %s294, 1
          %s2649 = scalar_lea.sflag [#allocation16], %s2648
          %s2650 = sand.u32 %s294, 1
          %s2651 = smul.addr %s2650, 128
          %s2652 = scalar_lea.vmem [#allocation15], %s2651
          %2654 = dma.done %s2649, 2048
        $region127: #{tpu_custom_call.1} parent=118 // pred_fallthru
          _
      $region119: #{tpu_custom_call.1} parent=5 // pred_fallthru
        _
    $region6: #{tpu_custom_call.1} parent=1 // loop_footer
      %s35 = sadd.s32 1, %s31
    $region7: #{tpu_custom_call.1} parent=1 // loop_footer_branch
      %30 = sbr.rel target = $region3
    $region8: #{tpu_custom_call.1} parent=1 // loop_exit
      _
    %2655 = vsyncpa [#allocation6], 1
    %s2656 = scalar_lea.sflag [#allocation6], 1
    %2657 = vsyncpa %s2656, 1
    %2658 = vsyncpa [#allocation9], 1
    %s2659 = scalar_lea.sflag [#allocation9], 1
    %2660 = vsyncpa %s2659, 1
    %2661 = vsyncpa [#allocation12], 1
    %2662 = vsyncpa [#allocation7], 1
    %s2663 = scalar_lea.sflag [#allocation7], 1
    %2664 = vsyncpa %s2663, 1
    %2665 = vsyncpa [#allocation16], 1
    %s2666 = scalar_lea.sflag [#allocation16], 1
    %2667 = vsyncpa %s2666, 1

</llo_original>
